<compile_context>
chip_gen: v7x
topology: tpu7x:2x2x1
jax: 0.10.0
libtpu: 0.0.40
codegen_flags: <defaults>
</compile_context>

<pallas_src>
import functools

import jax
import jax.numpy as jnp
from jax.experimental import pallas as pl
from jax.experimental.pallas import tpu as pltpu


def _se_kernel(xs_ref, w_ref, b_ref, x_ref, o_ref, *, cb):
    # xs_ref: [Cin, 1]    squeezed SE input vector for this batch element
    # w_ref : [Cout, Cin] full 1x1 conv weight (resident: constant index_map)
    # b_ref : [Cout, 1]   full conv bias       (resident: constant index_map)
    # x_ref : [Cb, HW]    feature-map slice (NCHW layout, HW on the lane axis)
    # o_ref : [Cb, HW]
    c = pl.program_id(1)
    off = pl.multiple_of(c * cb, 8)
    w = w_ref[pl.ds(off, cb), :]                                   # [Cb, Cin]
    b = b_ref[pl.ds(off, cb), :]                                   # [Cb, 1]
    s = jnp.dot(w, xs_ref[...], preferred_element_type=jnp.float32) + b
    s = jax.nn.sigmoid(s)                                          # EUP slot
    o_ref[...] = (x_ref[...] * s).astype(o_ref.dtype)


def _pick_num_tiles(cout, n, dtype):
    # Sublane packing requirement depends on element size.
    itemsize = jnp.dtype(dtype).itemsize
    sub = {4: 8, 2: 16, 1: 32}.get(itemsize, 8)
    if n >= 2:
        # The N grid axis already gives pipeline depth -> fewest, biggest tiles.
        candidates = (1, 2, 4)
    else:
        # N == 1: 2 tiles = one step per TensorCore on v7x, ~400+ KB blocks.
        candidates = (2, 4, 1)
    for nt in candidates:
        if cout % nt == 0 and (cout // nt) % sub == 0:
            return nt
    return 1


def conv1x1_sigmoid_mul(x409, x406, weight, bias, *, alias_feature_map=False):
    """x409: [N, Cin, 1, 1], x406: [N, Cout, H, W],
       weight: [Cout, Cin, 1, 1], bias: [Cout]  (PyTorch Conv2d convention).

    Set alias_feature_map=True only when the caller does not use x406
    after this call (lets the output reuse the feature-map buffer)."""
    N, Cin, _, _ = x409.shape
    _, Cout, H, W = x406.shape
    HW = H * W

    num_tiles = _pick_num_tiles(Cout, N, x406.dtype)
    cb = Cout // num_tiles                              # Cout block size

    xs = x409.reshape(N, Cin, 1)                        # [N, Cin, 1]   (free)
    x_f = x406.reshape(N, Cout, HW)                     # [N, Cout, HW] (free)
    w = weight.reshape(Cout, Cin)                       # [Cout, Cin]   (free)
    b = bias.reshape(Cout, 1)                           # [Cout, 1]     (free)

    x_esz = jnp.dtype(x406.dtype).itemsize
    w_esz = jnp.dtype(weight.dtype).itemsize
    cost = pl.CostEstimate(
        flops=2 * N * Cin * Cout,
        transcendentals=N * Cout,
        bytes_accessed=(2 * N * Cout * HW * x_esz       # feature in + out
                        + Cout * Cin * w_esz            # weight
                        + N * Cin * jnp.dtype(x409.dtype).itemsize
                        + Cout * jnp.dtype(bias.dtype).itemsize),
    )

    out = pl.pallas_call(
        functools.partial(_se_kernel, cb=cb),
        out_shape=jax.ShapeDtypeStruct((N, Cout, HW), x406.dtype),
        grid_spec=pltpu.PrefetchScalarGridSpec(
            num_scalar_prefetch=0,
            grid=(N, num_tiles),
            in_specs=[
                # SE input vector for this batch element.
                pl.BlockSpec((pl.Squeezed(), Cin, 1), lambda n, c: (n, 0, 0)),
                # Full weight / bias, constant block index -> fetched once,
                # stays resident in VMEM across all grid steps.
                pl.BlockSpec((Cout, Cin), lambda n, c: (0, 0)),
                pl.BlockSpec((Cout, 1), lambda n, c: (0, 0)),
                # Feature-map tile.
                pl.BlockSpec((pl.Squeezed(), cb, HW), lambda n, c: (n, c, 0)),
            ],
            out_specs=pl.BlockSpec((pl.Squeezed(), cb, HW),
                                   lambda n, c: (n, c, 0)),
        ),
        compiler_params=pltpu.CompilerParams(
            dimension_semantics=("parallel", "parallel")),
        cost_estimate=cost,
        input_output_aliases=({3: 0} if alias_feature_map else {}),
    )(xs, w, b, x_f)

    return out.reshape(N, Cout, H, W)                   # free (no transpose)


if __name__ == "__main__":
    key = jax.random.PRNGKey(0)
    k1, k2, k3, k4 = jax.random.split(key, 4)

    N, Cin, Cout, H, W = 1, 44, 1056, 14, 14

    x409 = jax.random.normal(k1, (N, Cin, 1, 1), dtype=jnp.float32)
    x406 = jax.random.normal(k2, (N, Cout, H, W), dtype=jnp.float32)
    weight = jax.random.normal(k3, (Cout, Cin, 1, 1), dtype=jnp.float32) * 0.1
    bias = jax.random.normal(k4, (Cout,), dtype=jnp.float32) * 0.1

    out = conv1x1_sigmoid_mul(x409, x406, weight, bias)
    out = jax.block_until_ready(out)

    # pure-JAX reference
    s_ref = jax.nn.sigmoid(
        x409.reshape(N, Cin) @ weight.reshape(Cout, Cin).T + bias[None, :]
    ).reshape(N, Cout, 1, 1)
    ref = s_ref * x406

    assert out.shape == (N, Cout, H, W)
    assert jnp.allclose(out, ref, atol=1e-5, rtol=1e-5)
    print("KERNEL_OK")
</pallas_src>

<mosaic_0001>
module attributes {stable_mosaic.version = 11 : i64} {
  func.func @_se_kernel(%arg0: i32, %arg1: i32, %arg2: memref<1x44x1xf32, #tpu.memory_space<vmem>>, %arg3: memref<1056x44xf32, #tpu.memory_space<vmem>>, %arg4: memref<1056x1xf32, #tpu.memory_space<vmem>>, %arg5: memref<1x528x196xf32, #tpu.memory_space<vmem>>, %arg6: memref<1x528x196xf32, #tpu.memory_space<vmem>>) attributes {dimension_semantics = [#tpu.dimension_semantics<parallel>, #tpu.dimension_semantics<parallel>], iteration_bounds = array<i64: 1, 2>, scalar_prefetch = 0 : i64, scratch_operands = 0 : i64, tpu.core_type = #tpu.core_type<tc>, window_params = [{transform_indices = @transform_0, window_bounds = array<i64: 1, 44, 1>}, {pipeline_mode = #tpu.pipeline_mode<synchronous>, transform_indices = @transform_1, window_bounds = array<i64: 1056, 44>}, {pipeline_mode = #tpu.pipeline_mode<synchronous>, transform_indices = @transform_2, window_bounds = array<i64: 1056, 1>}, {transform_indices = @transform_3, window_bounds = array<i64: 1, 528, 196>}, {transform_indices = @transform_4, window_bounds = array<i64: 1, 528, 196>}]} {
    %c528_i32 = arith.constant 528 : i32
    %0 = arith.muli %arg1, %c528_i32 : i32
    %1 = tpu.assume_multiple %0, 8 : i32
    %2 = arith.index_cast %1 : i32 to index
    %c0 = arith.constant 0 : index
    %3 = vector.load %arg3[%2, %c0] : memref<1056x44xf32, #tpu.memory_space<vmem>>, vector<528x44xf32>
    %4 = arith.index_cast %1 : i32 to index
    %c0_0 = arith.constant 0 : index
    %5 = vector.load %arg4[%4, %c0_0] : memref<1056x1xf32, #tpu.memory_space<vmem>>, vector<528x1xf32>
    %c0_1 = arith.constant 0 : index
    %c0_2 = arith.constant 0 : index
    %c0_3 = arith.constant 0 : index
    %6 = vector.load %arg2[%c0_1, %c0_2, %c0_3] : memref<1x44x1xf32, #tpu.memory_space<vmem>>, vector<1x44x1xf32>
    %7 = vector.shape_cast %6 : vector<1x44x1xf32> to vector<44x1xf32>
    %cst = arith.constant dense<0.000000e+00> : vector<528x1xf32>
    %8 = tpu.matmul %3, %7, %cst {dimension_numbers = #tpu.dot_dimension_numbers<[1], [0], [0], [1], [0, 0, 1, 1], [], []>} : vector<528x44xf32>, vector<44x1xf32>, vector<528x1xf32> -> vector<528x1xf32>
    %9 = arith.addf %8, %5 : vector<528x1xf32>
    %10 = arith.negf %9 : vector<528x1xf32>
    %11 = math.exp %10 : vector<528x1xf32>
    %cst_4 = arith.constant 1.000000e+00 : f32
    %12 = vector.broadcast %cst_4 : f32 to vector<528x1xf32>
    %13 = arith.addf %12, %11 : vector<528x1xf32>
    %14 = arith.divf %12, %13 : vector<528x1xf32>
    %c0_5 = arith.constant 0 : index
    %c0_6 = arith.constant 0 : index
    %c0_7 = arith.constant 0 : index
    %15 = vector.load %arg5[%c0_5, %c0_6, %c0_7] : memref<1x528x196xf32, #tpu.memory_space<vmem>>, vector<1x528x196xf32>
    %16 = vector.shape_cast %15 : vector<1x528x196xf32> to vector<528x196xf32>
    %17 = vector.broadcast %14 : vector<528x1xf32> to vector<528x196xf32>
    %18 = arith.mulf %16, %17 : vector<528x196xf32>
    %c0_8 = arith.constant 0 : index
    %c0_9 = arith.constant 0 : index
    %c0_10 = arith.constant 0 : index
    %19 = vector.load %arg6[%c0_8, %c0_9, %c0_10] : memref<1x528x196xf32, #tpu.memory_space<vmem>>, vector<1x528x196xf32>
    %20 = vector.shape_cast %19 : vector<1x528x196xf32> to vector<528x196xf32>
    %21 = vector.shape_cast %18 : vector<528x196xf32> to vector<1x528x196xf32>
    tpu.vector_store %arg6[%c0_8, %c0_9, %c0_10], %21 {strides = array<i32>} : memref<1x528x196xf32, #tpu.memory_space<vmem>>, vector<1x528x196xf32>,
    return
  }
  func.func @transform_0(%arg0: i32, %arg1: i32) -> (i32, i32, i32) {
    %c0_i32 = arith.constant 0 : i32
    %c0_i32_0 = arith.constant 0 : i32
    %c0_i32_1 = arith.constant 0 : i32
    return %arg0, %c0_i32, %c0_i32_0 : i32, i32, i32
  }
  func.func @transform_1(%arg0: i32, %arg1: i32) -> (i32, i32) {
    %c0_i32 = arith.constant 0 : i32
    %c0_i32_0 = arith.constant 0 : i32
    %c0_i32_1 = arith.constant 0 : i32
    return %c0_i32, %c0_i32_0 : i32, i32
  }
  func.func @transform_2(%arg0: i32, %arg1: i32) -> (i32, i32) {
    %c0_i32 = arith.constant 0 : i32
    %c0_i32_0 = arith.constant 0 : i32
    %c0_i32_1 = arith.constant 0 : i32
    return %c0_i32, %c0_i32_0 : i32, i32
  }
  func.func @transform_3(%arg0: i32, %arg1: i32) -> (i32, i32, i32) {
    %c0_i32 = arith.constant 0 : i32
    %c0_i32_0 = arith.constant 0 : i32
    return %arg0, %arg1, %c0_i32 : i32, i32, i32
  }
  func.func @transform_4(%arg0: i32, %arg1: i32) -> (i32, i32, i32) {
    %c0_i32 = arith.constant 0 : i32
    %c0_i32_0 = arith.constant 0 : i32
    return %arg0, %arg1, %c0_i32 : i32, i32, i32
  }
}

</mosaic_0001>

<llo_original>
// kernel: tpu_custom_call.1
$region0: #{tpu_custom_call.1}
  #allocation0 [shape = 'u32[]', space=smem, size = 0x4, offset = 0x4, fixed_abs, tag = 'smem constant byte address 0x4 - core index']
  #allocation1 [shape = 'u32[144,128]{1,0:T(1,128)}', space=vmem, size = 0x12000, scoped, tag = 'internal scratch']
  %s0 = inlined_call_operand.vmem [shape: f32[1,44,1], index: 0, kind: input, shape index: {}]
  %s1 = inlined_call_operand.vmem [shape: f32[1056,44], index: 1, kind: input, shape index: {}]
  %s2 = inlined_call_operand.vmem [shape: f32[1056,1], index: 2, kind: input, shape index: {}]
  %s3 = inlined_call_operand.vmem [shape: f32[1,1056,196], index: 3, kind: input, shape index: {}]
  %s4 = inlined_call_operand.vmem [shape: f32[1,1056,196], index: 4, kind: output, shape index: {}]
  %s5 = sld [smem:[#allocation0]]
  $region49: #{tpu_custom_call.1} parent=0
    _
  %s7 = ssub.s32 1, %s5
  %s8 = scalar_select 0, %s7, %s5
  loop: start=0, step=1, limit=4
  $region2: #{tpu_custom_call.1} parent=0 // loop_pre_header
    _
  $region3: #{tpu_custom_call.1} parent=0 // loop_header
    %s10 = sphi 0, %s14
    %p11 = scmp.ge.s32.totalorder %s10, 4
    %s17 = sphi 0, %s29
    %s18 = sphi 0, %s25
    %s19 = sphi 0, %s17
    %s20 = sphi 0, %s18
    %s21 = sphi 0, %s19
    %s22 = sphi 0, %s20
    %s32 = sphi 0, %s34
    %s35 = sphi 0, %s32
    %s36 = sphi 0, %s35
    %s52 = sphi 0, %s36
    %s56 = sphi 0, %s56
    %s58 = sphi 0, %s56
    %s59 = sphi 0, %s58
    %s73 = sphi 0, %s59
    %s77 = sphi 0, %s77
    %s79 = sphi 0, %s77
    %s80 = sphi 0, %s79
    %s94 = sphi 0, %s80
    %s102 = sphi 0, %s104
    %s105 = sphi 0, %s102
    %s106 = sphi 0, %s105
    %s122 = sphi 0, %s106
    %s130 = sphi 0, %s132
    %s133 = sphi 0, %s130
    %s134 = sphi 0, %s133
    %s150 = sphi 0, %s134
  $region4: #{tpu_custom_call.1} parent=0 // loop_header_branch
    %13 = sbr.rel (%p11) target = $region8
  $region5: #{tpu_custom_call.1} parent=0 // loop_body
    %s15 = ssub.s32 %s10, 1
    %s16 = ssub.s32 %s10, 2
    %s23 = sadd.s32 1, %s18
    %p24 = scmp.ge.s32.totalorder %s23, 2
    %s25 = scalar_select %p24, 0, %s23
    %s26 = sadd.s32 1, %s17
    %s27 = scalar_select %p24, %s26, %s17
    %p28 = scmp.ge.s32.totalorder %s27, 1
    %s29 = scalar_select %p28, 0, %s27
    %s30 = ssub.s32 %s17, %s29
    %p31 = scmp.eq.s32.totalorder %s30, 0
    %s33 = sadd.s32 %s32, 1
    %s34 = scalar_select %p31, %s32, %s33
    %p37 = pneg %p31
    %p38 = scmp.eq.s32.totalorder %s10, 1
    %p39 = por %p37, %p38
    %p40 = scmp.ne.s32.totalorder %s32, %s35
    %p41 = scmp.eq.s32.totalorder %s10, 0
    %p42 = por %p40, %p41
    %p43 = scmp.ne.s32.totalorder %s32, %s35
    %p44 = scmp.eq.s32.totalorder %s15, 1
    %p45 = por %p43, %p44
    %p46 = scmp.ne.s32.totalorder %s35, %s36
    %p47 = scmp.eq.s32.totalorder %s15, 0
    %p48 = por %p46, %p47
    %p49 = scmp.ne.s32.totalorder %s35, %s36
    %p50 = scmp.eq.s32.totalorder %s16, 1
    %p51 = por %p49, %p50
    %p53 = scmp.ne.s32.totalorder %s36, %s52
    %p54 = scmp.eq.s32.totalorder %s16, 0
    %p55 = por %p53, %p54
    %s57 = sadd.s32 %s56, 1
    %p60 = scmp.eq.s32.totalorder %s10, 1
    %p61 = scmp.ne.s32.totalorder %s56, %s58
    %p62 = scmp.eq.s32.totalorder %s10, 0
    %p63 = por %p61, %p62
    %p64 = scmp.ne.s32.totalorder %s56, %s58
    %p65 = scmp.eq.s32.totalorder %s15, 1
    %p66 = por %p64, %p65
    %p67 = scmp.ne.s32.totalorder %s58, %s59
    %p68 = scmp.eq.s32.totalorder %s15, 0
    %p69 = por %p67, %p68
    %p70 = scmp.ne.s32.totalorder %s58, %s59
    %p71 = scmp.eq.s32.totalorder %s16, 1
    %p72 = por %p70, %p71
    %p74 = scmp.ne.s32.totalorder %s59, %s73
    %p75 = scmp.eq.s32.totalorder %s16, 0
    %p76 = por %p74, %p75
    %s78 = sadd.s32 %s77, 1
    %p81 = scmp.eq.s32.totalorder %s10, 1
    %p82 = scmp.ne.s32.totalorder %s77, %s79
    %p83 = scmp.eq.s32.totalorder %s10, 0
    %p84 = por %p82, %p83
    %p85 = scmp.ne.s32.totalorder %s77, %s79
    %p86 = scmp.eq.s32.totalorder %s15, 1
    %p87 = por %p85, %p86
    %p88 = scmp.ne.s32.totalorder %s79, %s80
    %p89 = scmp.eq.s32.totalorder %s15, 0
    %p90 = por %p88, %p89
    %p91 = scmp.ne.s32.totalorder %s79, %s80
    %p92 = scmp.eq.s32.totalorder %s16, 1
    %p93 = por %p91, %p92
    %p95 = scmp.ne.s32.totalorder %s80, %s94
    %p96 = scmp.eq.s32.totalorder %s16, 0
    %p97 = por %p95, %p96
    %s98 = ssub.s32 %s17, %s29
    %s99 = ssub.s32 %s18, %s25
    %s100 = sor.u32 %s98, %s99
    %p101 = scmp.eq.s32.totalorder %s100, 0
    %s103 = sadd.s32 %s102, 1
    %s104 = scalar_select %p101, %s102, %s103
    %p107 = pneg %p101
    %p108 = scmp.eq.s32.totalorder %s10, 1
    %p109 = por %p107, %p108
    %p110 = scmp.ne.s32.totalorder %s102, %s105
    %p111 = scmp.eq.s32.totalorder %s10, 0
    %p112 = por %p110, %p111
    %p113 = scmp.ne.s32.totalorder %s102, %s105
    %p114 = scmp.eq.s32.totalorder %s15, 1
    %p115 = por %p113, %p114
    %p116 = scmp.ne.s32.totalorder %s105, %s106
    %p117 = scmp.eq.s32.totalorder %s15, 0
    %p118 = por %p116, %p117
    %p119 = scmp.ne.s32.totalorder %s105, %s106
    %p120 = scmp.eq.s32.totalorder %s16, 1
    %p121 = por %p119, %p120
    %p123 = scmp.ne.s32.totalorder %s106, %s122
    %p124 = scmp.eq.s32.totalorder %s16, 0
    %p125 = por %p123, %p124
    %s126 = ssub.s32 %s17, %s29
    %s127 = ssub.s32 %s18, %s25
    %s128 = sor.u32 %s126, %s127
    %p129 = scmp.eq.s32.totalorder %s128, 0
    %s131 = sadd.s32 %s130, 1
    %s132 = scalar_select %p129, %s130, %s131
    %p135 = pneg %p129
    %p136 = scmp.eq.s32.totalorder %s10, 1
    %p137 = por %p135, %p136
    %p138 = scmp.ne.s32.totalorder %s130, %s133
    %p139 = scmp.eq.s32.totalorder %s10, 0
    %p140 = por %p138, %p139
    %p141 = scmp.ne.s32.totalorder %s130, %s133
    %p142 = scmp.eq.s32.totalorder %s15, 1
    %p143 = por %p141, %p142
    %p144 = scmp.ne.s32.totalorder %s133, %s134
    %p145 = scmp.eq.s32.totalorder %s15, 0
    %p146 = por %p144, %p145
    %p147 = scmp.ne.s32.totalorder %s133, %s134
    %p148 = scmp.eq.s32.totalorder %s16, 1
    %p149 = por %p147, %p148
    %p151 = scmp.ne.s32.totalorder %s134, %s150
    %p152 = scmp.eq.s32.totalorder %s16, 0
    %p153 = por %p151, %p152
    %p154 = scmp.le.s32.totalorder 1, %s10
    %p155 = scmp.lt.s32.totalorder %s10, 3
    %p156 = pnand %p154, %p155
    %p157 = pneg %p156
    // Predicated region
    $region9: #{tpu_custom_call.1} parent=5 // pred_check
      _
    $region10: #{tpu_custom_call.1} parent=5 // pred_check_branch
      %159 = sbr.rel (%p156) target = $region12
    $region11: #{tpu_custom_call.1} parent=5 // pred_region
      %s160 = ssub.s32 %s10, 1
      // Predicated region
      $region13: #{tpu_custom_call.1} parent=11 // pred_check
        %p161 = pneg %p48
      $region14: #{tpu_custom_call.1} parent=11 // pred_check_branch
        %163 = sbr.rel (%p161) target = $region16
      $region15: #{tpu_custom_call.1} parent=11 // pred_region
        %p164 = scmp.lt.s32.totalorder %s19, 0
        %s165 = scalar_select %p164, %s19, 0
        %s166 = smul.addr %s165, 6
        %s167 = smul.addr %s166, 8
        %s168 = scalar_lea.vmem %s0, %s167
      $region16: #{tpu_custom_call.1} parent=11 // pred_fallthru
        _
      // Predicated region
      $region17: #{tpu_custom_call.1} parent=11 // pred_check
        %p169 = pneg %p69
      $region18: #{tpu_custom_call.1} parent=11 // pred_check_branch
        %171 = sbr.rel (%p169) target = $region20
      $region19: #{tpu_custom_call.1} parent=11 // pred_region
        _
      $region20: #{tpu_custom_call.1} parent=11 // pred_fallthru
        _
      // Predicated region
      $region21: #{tpu_custom_call.1} parent=11 // pred_check
        %p172 = pneg %p90
      $region22: #{tpu_custom_call.1} parent=11 // pred_check_branch
        %174 = sbr.rel (%p172) target = $region24
      $region23: #{tpu_custom_call.1} parent=11 // pred_region
        _
      $region24: #{tpu_custom_call.1} parent=11 // pred_fallthru
        _
    $region12: #{tpu_custom_call.1} parent=5 // pred_fallthru
      _
    %p175 = scmp.lt.s32.totalorder %s10, 2
    // Predicated region
    $region25: #{tpu_custom_call.1} parent=5 // pred_check
      %p176 = pneg %p175
    $region26: #{tpu_custom_call.1} parent=5 // pred_check_branch
      %178 = sbr.rel (%p176) target = $region28
    $region27: #{tpu_custom_call.1} parent=5 // pred_region
      // Predicated region
      $region29: #{tpu_custom_call.1} parent=27 // pred_check
        %p179 = pneg %p112
      $region30: #{tpu_custom_call.1} parent=27 // pred_check_branch
        %181 = sbr.rel (%p179) target = $region32
      $region31: #{tpu_custom_call.1} parent=27 // pred_region
        %s182 = smul.u32 66, %s18
        %p183 = scmp.lt.s32.totalorder %s17, 0
        %s184 = scalar_select %p183, %s17, 0
        %p185 = scmp.lt.s32.totalorder %s182, 131
        %s186 = scalar_select %p185, %s182, 131
        %s187 = smul.addr %s186, 2
        %s188 = smul.addr %s184, 264
        %s189 = sadd.s32 %s187, %s188
        %s190 = smul.addr %s189, 8
        %s191 = scalar_lea.vmem %s3, %s190
        %s192 = smul.u32 66, %s18
      $region32: #{tpu_custom_call.1} parent=27 // pred_fallthru
        _
    $region28: #{tpu_custom_call.1} parent=5 // pred_fallthru
      _
    %p193 = scmp.le.s32.totalorder 1, %s10
    %p194 = scmp.lt.s32.totalorder %s10, 3
    %p195 = pnand %p193, %p194
    %p196 = pneg %p195
    // Predicated region
    $region33: #{tpu_custom_call.1} parent=5 // pred_check
      _
    $region34: #{tpu_custom_call.1} parent=5 // pred_check_branch
      %198 = sbr.rel (%p195) target = $region36
    $region35: #{tpu_custom_call.1} parent=5 // pred_region
      %s199 = ssub.s32 %s10, 1
      %p200 = scmp.lt.s32.totalorder %s19, 0
      %s201 = scalar_select %p200, %s19, 0
      %s202 = smul.addr %s201, 6
      %s203 = smul.addr %s202, 8
      %s204 = scalar_lea.vmem %s0, %s203
      %p205 = pneg %p48
      %p206 = pneg %p45
      %p207 = pneg %p69
      %p208 = pneg %p66
      %p209 = pneg %p90
      %p210 = pneg %p87
      %s211 = smul.u32 66, %s20
      %p212 = scmp.lt.s32.totalorder %s19, 0
      %s213 = scalar_select %p212, %s19, 0
      %p214 = scmp.lt.s32.totalorder %s211, 131
      %s215 = scalar_select %p214, %s211, 131
      %s216 = smul.addr %s215, 2
      %s217 = smul.addr %s213, 264
      %s218 = sadd.s32 %s216, %s217
      %s219 = smul.addr %s218, 8
      %s220 = scalar_lea.vmem %s3, %s219
      %p221 = pneg %p118
      %p222 = pneg %p115
      %p223 = pneg %p146
      %p224 = pneg %p143
      %s225 = smul.u32 66, %s20
      %p226 = scmp.lt.s32.totalorder %s19, 0
      %s227 = scalar_select %p226, %s19, 0
      %p228 = scmp.lt.s32.totalorder %s225, 131
      %s229 = scalar_select %p228, %s225, 131
      %s230 = smul.addr %s229, 2
      %s231 = smul.addr %s227, 264
      %s232 = sadd.s32 %s230, %s231
      %s233 = smul.addr %s232, 8
      %s234 = scalar_lea.vmem %s4, %s233
      %p235 = scmp.lt.s32.totalorder %s19, 0
      %s236 = scalar_select %p235, %s19, 0
      %s237 = smul.addr %s236, 6
      %s238 = smul.addr %s237, 8
      %s239 = scalar_lea.vmem %s0, %s238
      %s240 = smul.u32 66, %s20
      %p241 = scmp.lt.s32.totalorder %s19, 0
      %s242 = scalar_select %p241, %s19, 0
      %p243 = scmp.lt.s32.totalorder %s240, 131
      %s244 = scalar_select %p243, %s240, 131
      %s245 = smul.addr %s244, 2
      %s246 = smul.addr %s242, 264
      %s247 = sadd.s32 %s245, %s246
      %s248 = smul.addr %s247, 8
      %s249 = scalar_lea.vmem %s3, %s248
      %s250 = smul.u32 66, %s20
      %s251 = smul.u32 66, %s20
      %p252 = scmp.lt.s32.totalorder %s19, 0
      %s253 = scalar_select %p252, %s19, 0
      %p254 = scmp.lt.s32.totalorder %s251, 131
      %s255 = scalar_select %p254, %s251, 131
      %s256 = smul.addr %s255, 2
      %s257 = smul.addr %s253, 264
      %s258 = sadd.s32 %s256, %s257
      %s259 = smul.addr %s258, 8
      %s260 = scalar_lea.vmem %s4, %s259
      %s261 = smul.u32 66, %s20
      %s262 = smul.u32 %s20, 528
      %s263 = scalar_lea.vmem %s1, %s262
      %v264 = vld [vmem:[%s263] sm:$0xff]
      %v265 = vld [vmem:[%s263 + $0x8] sm:$0xff]
      %v266 = vld [vmem:[%s263 + $0x10] sm:$0xff]
      %v267 = vld [vmem:[%s263 + $0x18] sm:$0xff]
      %v268 = vld [vmem:[%s263 + $0x20] sm:$0xff]
      %v269 = vld [vmem:[%s263 + $0x28] sm:$0xff]
      %v270 = vld [vmem:[%s263 + $0x30] sm:$0xff]
      %v271 = vld [vmem:[%s263 + $0x38] sm:$0xff]
      %v272 = vld [vmem:[%s263 + $0x40] sm:$0xff]
      %v273 = vld [vmem:[%s263 + $0x48] sm:$0xff]
      %v274 = vld [vmem:[%s263 + $0x50] sm:$0xff]
      %v275 = vld [vmem:[%s263 + $0x58] sm:$0xff]
      %v276 = vld [vmem:[%s263 + $0x60] sm:$0xff]
      %v277 = vld [vmem:[%s263 + $0x68] sm:$0xff]
      %v278 = vld [vmem:[%s263 + $0x70] sm:$0xff]
      %v279 = vld [vmem:[%s263 + $0x78] sm:$0xff]
      %v280 = vld [vmem:[%s263 + $0x80] sm:$0xff]
      %v281 = vld [vmem:[%s263 + $0x88] sm:$0xff]
      %v282 = vld [vmem:[%s263 + $0x90] sm:$0xff]
      %v283 = vld [vmem:[%s263 + $0x98] sm:$0xff]
      %v284 = vld [vmem:[%s263 + $0xa0] sm:$0xff]
      %v285 = vld [vmem:[%s263 + $0xa8] sm:$0xff]
      %v286 = vld [vmem:[%s263 + $0xb0] sm:$0xff]
      %v287 = vld [vmem:[%s263 + $0xb8] sm:$0xff]
      %v288 = vld [vmem:[%s263 + $0xc0] sm:$0xff]
      %v289 = vld [vmem:[%s263 + $0xc8] sm:$0xff]
      %v290 = vld [vmem:[%s263 + $0xd0] sm:$0xff]
      %v291 = vld [vmem:[%s263 + $0xd8] sm:$0xff]
      %v292 = vld [vmem:[%s263 + $0xe0] sm:$0xff]
      %v293 = vld [vmem:[%s263 + $0xe8] sm:$0xff]
      %v294 = vld [vmem:[%s263 + $0xf0] sm:$0xff]
      %v295 = vld [vmem:[%s263 + $0xf8] sm:$0xff]
      %v296 = vld [vmem:[%s263 + $0x100] sm:$0xff]
      %v297 = vld [vmem:[%s263 + $0x108] sm:$0xff]
      %v298 = vld [vmem:[%s263 + $0x110] sm:$0xff]
      %v299 = vld [vmem:[%s263 + $0x118] sm:$0xff]
      %v300 = vld [vmem:[%s263 + $0x120] sm:$0xff]
      %v301 = vld [vmem:[%s263 + $0x128] sm:$0xff]
      %v302 = vld [vmem:[%s263 + $0x130] sm:$0xff]
      %v303 = vld [vmem:[%s263 + $0x138] sm:$0xff]
      %v304 = vld [vmem:[%s263 + $0x140] sm:$0xff]
      %v305 = vld [vmem:[%s263 + $0x148] sm:$0xff]
      %v306 = vld [vmem:[%s263 + $0x150] sm:$0xff]
      %v307 = vld [vmem:[%s263 + $0x158] sm:$0xff]
      %v308 = vld [vmem:[%s263 + $0x160] sm:$0xff]
      %v309 = vld [vmem:[%s263 + $0x168] sm:$0xff]
      %v310 = vld [vmem:[%s263 + $0x170] sm:$0xff]
      %v311 = vld [vmem:[%s263 + $0x178] sm:$0xff]
      %v312 = vld [vmem:[%s263 + $0x180] sm:$0xff]
      %v313 = vld [vmem:[%s263 + $0x188] sm:$0xff]
      %v314 = vld [vmem:[%s263 + $0x190] sm:$0xff]
      %v315 = vld [vmem:[%s263 + $0x198] sm:$0xff]
      %v316 = vld [vmem:[%s263 + $0x1a0] sm:$0xff]
      %v317 = vld [vmem:[%s263 + $0x1a8] sm:$0xff]
      %v318 = vld [vmem:[%s263 + $0x1b0] sm:$0xff]
      %v319 = vld [vmem:[%s263 + $0x1b8] sm:$0xff]
      %v320 = vld [vmem:[%s263 + $0x1c0] sm:$0xff]
      %v321 = vld [vmem:[%s263 + $0x1c8] sm:$0xff]
      %v322 = vld [vmem:[%s263 + $0x1d0] sm:$0xff]
      %v323 = vld [vmem:[%s263 + $0x1d8] sm:$0xff]
      %v324 = vld [vmem:[%s263 + $0x1e0] sm:$0xff]
      %v325 = vld [vmem:[%s263 + $0x1e8] sm:$0xff]
      %v326 = vld [vmem:[%s263 + $0x1f0] sm:$0xff]
      %v327 = vld [vmem:[%s263 + $0x1f8] sm:$0xff]
      %v328 = vld [vmem:[%s263 + $0x200] sm:$0xff]
      %v329 = vld [vmem:[%s263 + $0x208] sm:$0xff]
      %s330 = scalar_lea.vmem %s2, %s262
      %v331 = vld [vmem:[%s330] sm:$0xff]
      %v332 = vld [vmem:[%s330 + $0x8] sm:$0xff]
      %v333 = vld [vmem:[%s330 + $0x10] sm:$0xff]
      %v334 = vld [vmem:[%s330 + $0x18] sm:$0xff]
      %v335 = vld [vmem:[%s330 + $0x20] sm:$0xff]
      %v336 = vld [vmem:[%s330 + $0x28] sm:$0xff]
      %v337 = vld [vmem:[%s330 + $0x30] sm:$0xff]
      %v338 = vld [vmem:[%s330 + $0x38] sm:$0xff]
      %v339 = vld [vmem:[%s330 + $0x40] sm:$0xff]
      %v340 = vld [vmem:[%s330 + $0x48] sm:$0xff]
      %v341 = vld [vmem:[%s330 + $0x50] sm:$0xff]
      %v342 = vld [vmem:[%s330 + $0x58] sm:$0xff]
      %v343 = vld [vmem:[%s330 + $0x60] sm:$0xff]
      %v344 = vld [vmem:[%s330 + $0x68] sm:$0xff]
      %v345 = vld [vmem:[%s330 + $0x70] sm:$0xff]
      %v346 = vld [vmem:[%s330 + $0x78] sm:$0xff]
      %v347 = vld [vmem:[%s330 + $0x80] sm:$0xff]
      %v348 = vld [vmem:[%s330 + $0x88] sm:$0xff]
      %v349 = vld [vmem:[%s330 + $0x90] sm:$0xff]
      %v350 = vld [vmem:[%s330 + $0x98] sm:$0xff]
      %v351 = vld [vmem:[%s330 + $0xa0] sm:$0xff]
      %v352 = vld [vmem:[%s330 + $0xa8] sm:$0xff]
      %v353 = vld [vmem:[%s330 + $0xb0] sm:$0xff]
      %v354 = vld [vmem:[%s330 + $0xb8] sm:$0xff]
      %v355 = vld [vmem:[%s330 + $0xc0] sm:$0xff]
      %v356 = vld [vmem:[%s330 + $0xc8] sm:$0xff]
      %v357 = vld [vmem:[%s330 + $0xd0] sm:$0xff]
      %v358 = vld [vmem:[%s330 + $0xd8] sm:$0xff]
      %v359 = vld [vmem:[%s330 + $0xe0] sm:$0xff]
      %v360 = vld [vmem:[%s330 + $0xe8] sm:$0xff]
      %v361 = vld [vmem:[%s330 + $0xf0] sm:$0xff]
      %v362 = vld [vmem:[%s330 + $0xf8] sm:$0xff]
      %v363 = vld [vmem:[%s330 + $0x100] sm:$0xff]
      %v364 = vld [vmem:[%s330 + $0x108] sm:$0xff]
      %v365 = vld [vmem:[%s330 + $0x110] sm:$0xff]
      %v366 = vld [vmem:[%s330 + $0x118] sm:$0xff]
      %v367 = vld [vmem:[%s330 + $0x120] sm:$0xff]
      %v368 = vld [vmem:[%s330 + $0x128] sm:$0xff]
      %v369 = vld [vmem:[%s330 + $0x130] sm:$0xff]
      %v370 = vld [vmem:[%s330 + $0x138] sm:$0xff]
      %v371 = vld [vmem:[%s330 + $0x140] sm:$0xff]
      %v372 = vld [vmem:[%s330 + $0x148] sm:$0xff]
      %v373 = vld [vmem:[%s330 + $0x150] sm:$0xff]
      %v374 = vld [vmem:[%s330 + $0x158] sm:$0xff]
      %v375 = vld [vmem:[%s330 + $0x160] sm:$0xff]
      %v376 = vld [vmem:[%s330 + $0x168] sm:$0xff]
      %v377 = vld [vmem:[%s330 + $0x170] sm:$0xff]
      %v378 = vld [vmem:[%s330 + $0x178] sm:$0xff]
      %v379 = vld [vmem:[%s330 + $0x180] sm:$0xff]
      %v380 = vld [vmem:[%s330 + $0x188] sm:$0xff]
      %v381 = vld [vmem:[%s330 + $0x190] sm:$0xff]
      %v382 = vld [vmem:[%s330 + $0x198] sm:$0xff]
      %v383 = vld [vmem:[%s330 + $0x1a0] sm:$0xff]
      %v384 = vld [vmem:[%s330 + $0x1a8] sm:$0xff]
      %v385 = vld [vmem:[%s330 + $0x1b0] sm:$0xff]
      %v386 = vld [vmem:[%s330 + $0x1b8] sm:$0xff]
      %v387 = vld [vmem:[%s330 + $0x1c0] sm:$0xff]
      %v388 = vld [vmem:[%s330 + $0x1c8] sm:$0xff]
      %v389 = vld [vmem:[%s330 + $0x1d0] sm:$0xff]
      %v390 = vld [vmem:[%s330 + $0x1d8] sm:$0xff]
      %v391 = vld [vmem:[%s330 + $0x1e0] sm:$0xff]
      %v392 = vld [vmem:[%s330 + $0x1e8] sm:$0xff]
      %v393 = vld [vmem:[%s330 + $0x1f0] sm:$0xff]
      %v394 = vld [vmem:[%s330 + $0x1f8] sm:$0xff]
      %v395 = vld [vmem:[%s330 + $0x200] sm:$0xff]
      %v396 = vld [vmem:[%s330 + $0x208] sm:$0xff]
      %v397 = vld [vmem:[%s239] sm:$0xff]
      %v398 = vld [vmem:[%s239 + $0x8] sm:$0xff]
      %v399 = vld [vmem:[%s239 + $0x10] sm:$0xff]
      %v400 = vld [vmem:[%s239 + $0x18] sm:$0xff]
      %v401 = vld [vmem:[%s239 + $0x20] sm:$0xff]
      %v402 = vld [vmem:[%s239 + $0x28] sm:$0xf]
      %vm403 = vcmask 359424
      %v405 = vsel %vm403, %v264, 0
      %v408 = vsel %vm403, %v265, 0
      %v411 = vsel %vm403, %v266, 0
      %v414 = vsel %vm403, %v267, 0
      %v417 = vsel %vm403, %v268, 0
      %v420 = vsel %vm403, %v269, 0
      %v423 = vsel %vm403, %v270, 0
      %v426 = vsel %vm403, %v271, 0
      %v429 = vsel %vm403, %v272, 0
      %v432 = vsel %vm403, %v273, 0
      %v435 = vsel %vm403, %v274, 0
      %v438 = vsel %vm403, %v275, 0
      %v441 = vsel %vm403, %v276, 0
      %v444 = vsel %vm403, %v277, 0
      %v447 = vsel %vm403, %v278, 0
      %v450 = vsel %vm403, %v279, 0
      %v453 = vsel %vm403, %v280, 0
      %v456 = vsel %vm403, %v281, 0
      %v459 = vsel %vm403, %v282, 0
      %v462 = vsel %vm403, %v283, 0
      %v465 = vsel %vm403, %v284, 0
      %v468 = vsel %vm403, %v285, 0
      %v471 = vsel %vm403, %v286, 0
      %v474 = vsel %vm403, %v287, 0
      %v477 = vsel %vm403, %v288, 0
      %v480 = vsel %vm403, %v289, 0
      %v483 = vsel %vm403, %v290, 0
      %v486 = vsel %vm403, %v291, 0
      %v489 = vsel %vm403, %v292, 0
      %v492 = vsel %vm403, %v293, 0
      %v495 = vsel %vm403, %v294, 0
      %v498 = vsel %vm403, %v295, 0
      %v501 = vsel %vm403, %v296, 0
      %v504 = vsel %vm403, %v297, 0
      %v507 = vsel %vm403, %v298, 0
      %v510 = vsel %vm403, %v299, 0
      %v513 = vsel %vm403, %v300, 0
      %v516 = vsel %vm403, %v301, 0
      %v519 = vsel %vm403, %v302, 0
      %v522 = vsel %vm403, %v303, 0
      %v525 = vsel %vm403, %v304, 0
      %v528 = vsel %vm403, %v305, 0
      %v531 = vsel %vm403, %v306, 0
      %v534 = vsel %vm403, %v307, 0
      %v537 = vsel %vm403, %v308, 0
      %v540 = vsel %vm403, %v309, 0
      %v543 = vsel %vm403, %v310, 0
      %v546 = vsel %vm403, %v311, 0
      %v549 = vsel %vm403, %v312, 0
      %v552 = vsel %vm403, %v313, 0
      %v555 = vsel %vm403, %v314, 0
      %v558 = vsel %vm403, %v315, 0
      %v561 = vsel %vm403, %v316, 0
      %v564 = vsel %vm403, %v317, 0
      %v567 = vsel %vm403, %v318, 0
      %v570 = vsel %vm403, %v319, 0
      %v573 = vsel %vm403, %v320, 0
      %v576 = vsel %vm403, %v321, 0
      %v579 = vsel %vm403, %v322, 0
      %v582 = vsel %vm403, %v323, 0
      %v585 = vsel %vm403, %v324, 0
      %v588 = vsel %vm403, %v325, 0
      %v591 = vsel %vm403, %v326, 0
      %v594 = vsel %vm403, %v327, 0
      %v597 = vsel %vm403, %v328, 0
      %v600 = vsel %vm403, %v329, 0
      %vm602 = vcmask 1043456
      %v604 = vsel %vm602, %v402, 0
      %606 = vmatprep.subr.mxu0 0.0
      %607 = vmatpush1.msra.mxu0 %v397
      %608 = vmatprep.subr.mxu0 0.0
      %609 = vmatpush1.msra.mxu0 %v398
      %610 = vmatprep.subr.mxu0 0.0
      %611 = vmatpush1.msra.mxu0 %v399
      %612 = vmatprep.subr.mxu0 0.0
      %613 = vmatpush1.msra.mxu0 %v400
      %614 = vmatprep.subr.mxu0 0.0
      %615 = vmatpush1.msra.mxu0 %v401
      %616 = vmatprep.subr.mxu0 0.0
      %617 = vmatpush1.msra.mxu0 %v604
      %618 = vmatprep.subr.mxu0 0.0
      %619 = vmatpush1.msra.mxu0 0.0
      %620 = vmatprep.subr.mxu0 0.0
      %621 = vmatpush1.msra.mxu0 0.0
      %622 = vmatprep.subr.mxu0 0.0
      %623 = vmatpush1.msra.mxu0 0.0
      %624 = vmatprep.subr.mxu0 0.0
      %625 = vmatpush1.msra.mxu0 0.0
      %626 = vmatprep.subr.mxu0 0.0
      %627 = vmatpush1.msra.mxu0 0.0
      %628 = vmatprep.subr.mxu0 0.0
      %629 = vmatpush1.msra.mxu0 0.0
      %630 = vmatprep.subr.mxu0 0.0
      %631 = vmatpush1.msra.mxu0 0.0
      %632 = vmatprep.subr.mxu0 0.0
      %633 = vmatpush1.msra.mxu0 0.0
      %634 = vmatprep.subr.mxu0 0.0
      %635 = vmatpush1.msra.mxu0 0.0
      %636 = vmatprep.subr.mxu0 0.0
      %637 = vmatpush1.msra.mxu0 0.0
      %638 = vmatprep.subr.mxu0 0.0
      %639 = vmatpush1.msra.mxu0 0.0
      %640 = vmatprep.subr.mxu0 0.0
      %641 = vmatpush1.msra.mxu0 0.0
      %642 = vmatprep.subr.mxu0 0.0
      %643 = vmatpush1.msra.mxu0 0.0
      %644 = vmatprep.subr.mxu0 0.0
      %645 = vmatpush1.msra.mxu0 0.0
      %646 = vmatprep.subr.mxu0 0.0
      %647 = vmatpush1.msra.mxu0 0.0
      %648 = vmatprep.subr.mxu0 0.0
      %649 = vmatpush1.msra.mxu0 0.0
      %650 = vmatprep.subr.mxu0 0.0
      %651 = vmatpush1.msra.mxu0 0.0
      %652 = vmatprep.subr.mxu0 0.0
      %653 = vmatpush1.msra.mxu0 0.0
      %654 = vmatprep.subr.mxu0 0.0
      %655 = vmatpush1.msra.mxu0 0.0
      %656 = vmatprep.subr.mxu0 0.0
      %657 = vmatpush1.msra.mxu0 0.0
      %658 = vmatprep.subr.mxu0 0.0
      %659 = vmatpush1.msra.mxu0 0.0
      %660 = vmatprep.subr.mxu0 0.0
      %661 = vmatpush1.msra.mxu0 0.0
      %662 = vmatprep.subr.mxu0 0.0
      %663 = vmatpush1.msra.mxu0 0.0
      %664 = vmatprep.subr.mxu0 0.0
      %665 = vmatpush1.msra.mxu0 0.0
      %666 = vmatprep.subr.mxu0 0.0
      %667 = vmatpush1.msra.mxu0 0.0
      %668 = vmatprep.subr.mxu0 0.0
      %669 = vmatpush1.msra.mxu0 0.0
      %670 = vmatprep.mubr.f32.mxu0 0.0
      %671 = vmatmul.mubr.f32.gmra.mrb[0].mxu0 %v405
      %v672 = vpop.f32.mrb[0].mxu0
      %v673 = vadd.f32 %v331, %v672
      %v674 = vpop.f32.mrb[0].mxu0
      %675 = vmatprep.mubr.f32.mxu0 0.0
      %676 = vmatmul.mubr.f32.gmra.mrb[0].mxu0 %v408
      %v677 = vpop.f32.mrb[0].mxu0
      %v678 = vadd.f32 %v332, %v677
      %v679 = vpop.f32.mrb[0].mxu0
      %680 = vmatprep.mubr.f32.mxu0 0.0
      %681 = vmatmul.mubr.f32.gmra.mrb[0].mxu0 %v411
      %v682 = vpop.f32.mrb[0].mxu0
      %v683 = vadd.f32 %v333, %v682
      %v684 = vpop.f32.mrb[0].mxu0
      %685 = vmatprep.mubr.f32.mxu0 0.0
      %686 = vmatmul.mubr.f32.gmra.mrb[0].mxu0 %v414
      %v687 = vpop.f32.mrb[0].mxu0
      %v688 = vadd.f32 %v334, %v687
      %v689 = vpop.f32.mrb[0].mxu0
      %690 = vmatprep.mubr.f32.mxu0 0.0
      %691 = vmatmul.mubr.f32.gmra.mrb[0].mxu0 %v417
      %v692 = vpop.f32.mrb[0].mxu0
      %v693 = vadd.f32 %v335, %v692
      %v694 = vpop.f32.mrb[0].mxu0
      %695 = vmatprep.mubr.f32.mxu0 0.0
      %696 = vmatmul.mubr.f32.gmra.mrb[0].mxu0 %v420
      %v697 = vpop.f32.mrb[0].mxu0
      %v698 = vadd.f32 %v336, %v697
      %v699 = vpop.f32.mrb[0].mxu0
      %700 = vmatprep.mubr.f32.mxu0 0.0
      %701 = vmatmul.mubr.f32.gmra.mrb[0].mxu0 %v423
      %v702 = vpop.f32.mrb[0].mxu0
      %v703 = vadd.f32 %v337, %v702
      %v704 = vpop.f32.mrb[0].mxu0
      %705 = vmatprep.mubr.f32.mxu0 0.0
      %706 = vmatmul.mubr.f32.gmra.mrb[0].mxu0 %v426
      %v707 = vpop.f32.mrb[0].mxu0
      %v708 = vadd.f32 %v338, %v707
      %v709 = vpop.f32.mrb[0].mxu0
      %710 = vmatprep.mubr.f32.mxu0 0.0
      %711 = vmatmul.mubr.f32.gmra.mrb[0].mxu0 %v429
      %v712 = vpop.f32.mrb[0].mxu0
      %v713 = vadd.f32 %v339, %v712
      %v714 = vpop.f32.mrb[0].mxu0
      %715 = vmatprep.mubr.f32.mxu0 0.0
      %716 = vmatmul.mubr.f32.gmra.mrb[0].mxu0 %v432
      %v717 = vpop.f32.mrb[0].mxu0
      %v718 = vadd.f32 %v340, %v717
      %v719 = vpop.f32.mrb[0].mxu0
      %720 = vmatprep.mubr.f32.mxu0 0.0
      %721 = vmatmul.mubr.f32.gmra.mrb[0].mxu0 %v435
      %v722 = vpop.f32.mrb[0].mxu0
      %v723 = vadd.f32 %v341, %v722
      %v724 = vpop.f32.mrb[0].mxu0
      %725 = vmatprep.mubr.f32.mxu0 0.0
      %726 = vmatmul.mubr.f32.gmra.mrb[0].mxu0 %v438
      %v727 = vpop.f32.mrb[0].mxu0
      %v728 = vadd.f32 %v342, %v727
      %v729 = vpop.f32.mrb[0].mxu0
      %730 = vmatprep.mubr.f32.mxu0 0.0
      %731 = vmatmul.mubr.f32.gmra.mrb[0].mxu0 %v441
      %v732 = vpop.f32.mrb[0].mxu0
      %v733 = vadd.f32 %v343, %v732
      %v734 = vpop.f32.mrb[0].mxu0
      %735 = vmatprep.mubr.f32.mxu0 0.0
      %736 = vmatmul.mubr.f32.gmra.mrb[0].mxu0 %v444
      %v737 = vpop.f32.mrb[0].mxu0
      %v738 = vadd.f32 %v344, %v737
      %v739 = vpop.f32.mrb[0].mxu0
      %740 = vmatprep.mubr.f32.mxu0 0.0
      %741 = vmatmul.mubr.f32.gmra.mrb[0].mxu0 %v447
      %v742 = vpop.f32.mrb[0].mxu0
      %v743 = vadd.f32 %v345, %v742
      %v744 = vpop.f32.mrb[0].mxu0
      %745 = vmatprep.mubr.f32.mxu0 0.0
      %746 = vmatmul.mubr.f32.gmra.mrb[0].mxu0 %v450
      %v747 = vpop.f32.mrb[0].mxu0
      %v748 = vadd.f32 %v346, %v747
      %v749 = vpop.f32.mrb[0].mxu0
      %750 = vmatprep.mubr.f32.mxu0 0.0
      %751 = vmatmul.mubr.f32.gmra.mrb[0].mxu0 %v453
      %v752 = vpop.f32.mrb[0].mxu0
      %v753 = vadd.f32 %v347, %v752
      %v754 = vpop.f32.mrb[0].mxu0
      %755 = vmatprep.mubr.f32.mxu0 0.0
      %756 = vmatmul.mubr.f32.gmra.mrb[0].mxu0 %v456
      %v757 = vpop.f32.mrb[0].mxu0
      %v758 = vadd.f32 %v348, %v757
      %v759 = vpop.f32.mrb[0].mxu0
      %760 = vmatprep.mubr.f32.mxu0 0.0
      %761 = vmatmul.mubr.f32.gmra.mrb[0].mxu0 %v459
      %v762 = vpop.f32.mrb[0].mxu0
      %v763 = vadd.f32 %v349, %v762
      %v764 = vpop.f32.mrb[0].mxu0
      %765 = vmatprep.mubr.f32.mxu0 0.0
      %766 = vmatmul.mubr.f32.gmra.mrb[0].mxu0 %v462
      %v767 = vpop.f32.mrb[0].mxu0
      %v768 = vadd.f32 %v350, %v767
      %v769 = vpop.f32.mrb[0].mxu0
      %770 = vmatprep.mubr.f32.mxu0 0.0
      %771 = vmatmul.mubr.f32.gmra.mrb[0].mxu0 %v465
      %v772 = vpop.f32.mrb[0].mxu0
      %v773 = vadd.f32 %v351, %v772
      %v774 = vpop.f32.mrb[0].mxu0
      %775 = vmatprep.mubr.f32.mxu0 0.0
      %776 = vmatmul.mubr.f32.gmra.mrb[0].mxu0 %v468
      %v777 = vpop.f32.mrb[0].mxu0
      %v778 = vadd.f32 %v352, %v777
      %v779 = vpop.f32.mrb[0].mxu0
      %780 = vmatprep.mubr.f32.mxu0 0.0
      %781 = vmatmul.mubr.f32.gmra.mrb[0].mxu0 %v471
      %v782 = vpop.f32.mrb[0].mxu0
      %v783 = vadd.f32 %v353, %v782
      %v784 = vpop.f32.mrb[0].mxu0
      %785 = vmatprep.mubr.f32.mxu0 0.0
      %786 = vmatmul.mubr.f32.gmra.mrb[0].mxu0 %v474
      %v787 = vpop.f32.mrb[0].mxu0
      %v788 = vadd.f32 %v354, %v787
      %v789 = vpop.f32.mrb[0].mxu0
      %790 = vmatprep.mubr.f32.mxu0 0.0
      %791 = vmatmul.mubr.f32.gmra.mrb[0].mxu0 %v477
      %v792 = vpop.f32.mrb[0].mxu0
      %v793 = vadd.f32 %v355, %v792
      %v794 = vpop.f32.mrb[0].mxu0
      %795 = vmatprep.mubr.f32.mxu0 0.0
      %796 = vmatmul.mubr.f32.gmra.mrb[0].mxu0 %v480
      %v797 = vpop.f32.mrb[0].mxu0
      %v798 = vadd.f32 %v356, %v797
      %v799 = vpop.f32.mrb[0].mxu0
      %800 = vmatprep.mubr.f32.mxu0 0.0
      %801 = vmatmul.mubr.f32.gmra.mrb[0].mxu0 %v483
      %v802 = vpop.f32.mrb[0].mxu0
      %v803 = vadd.f32 %v357, %v802
      %v804 = vpop.f32.mrb[0].mxu0
      %805 = vmatprep.mubr.f32.mxu0 0.0
      %806 = vmatmul.mubr.f32.gmra.mrb[0].mxu0 %v486
      %v807 = vpop.f32.mrb[0].mxu0
      %v808 = vadd.f32 %v358, %v807
      %v809 = vpop.f32.mrb[0].mxu0
      %810 = vmatprep.mubr.f32.mxu0 0.0
      %811 = vmatmul.mubr.f32.gmra.mrb[0].mxu0 %v489
      %v812 = vpop.f32.mrb[0].mxu0
      %v813 = vadd.f32 %v359, %v812
      %v814 = vpop.f32.mrb[0].mxu0
      %815 = vmatprep.mubr.f32.mxu0 0.0
      %816 = vmatmul.mubr.f32.gmra.mrb[0].mxu0 %v492
      %v817 = vpop.f32.mrb[0].mxu0
      %v818 = vadd.f32 %v360, %v817
      %v819 = vpop.f32.mrb[0].mxu0
      %820 = vmatprep.mubr.f32.mxu0 0.0
      %821 = vmatmul.mubr.f32.gmra.mrb[0].mxu0 %v495
      %v822 = vpop.f32.mrb[0].mxu0
      %v823 = vadd.f32 %v361, %v822
      %v824 = vpop.f32.mrb[0].mxu0
      %825 = vmatprep.mubr.f32.mxu0 0.0
      %826 = vmatmul.mubr.f32.gmra.mrb[0].mxu0 %v498
      %v827 = vpop.f32.mrb[0].mxu0
      %v828 = vadd.f32 %v362, %v827
      %v829 = vpop.f32.mrb[0].mxu0
      %830 = vmatprep.mubr.f32.mxu0 0.0
      %831 = vmatmul.mubr.f32.gmra.mrb[0].mxu0 %v501
      %v832 = vpop.f32.mrb[0].mxu0
      %v833 = vadd.f32 %v363, %v832
      %v834 = vpop.f32.mrb[0].mxu0
      %835 = vmatprep.mubr.f32.mxu0 0.0
      %836 = vmatmul.mubr.f32.gmra.mrb[0].mxu0 %v504
      %v837 = vpop.f32.mrb[0].mxu0
      %v838 = vadd.f32 %v364, %v837
      %v839 = vpop.f32.mrb[0].mxu0
      %840 = vmatprep.mubr.f32.mxu0 0.0
      %841 = vmatmul.mubr.f32.gmra.mrb[0].mxu0 %v507
      %v842 = vpop.f32.mrb[0].mxu0
      %v843 = vadd.f32 %v365, %v842
      %v844 = vpop.f32.mrb[0].mxu0
      %845 = vmatprep.mubr.f32.mxu0 0.0
      %846 = vmatmul.mubr.f32.gmra.mrb[0].mxu0 %v510
      %v847 = vpop.f32.mrb[0].mxu0
      %v848 = vadd.f32 %v366, %v847
      %v849 = vpop.f32.mrb[0].mxu0
      %850 = vmatprep.mubr.f32.mxu0 0.0
      %851 = vmatmul.mubr.f32.gmra.mrb[0].mxu0 %v513
      %v852 = vpop.f32.mrb[0].mxu0
      %v853 = vadd.f32 %v367, %v852
      %v854 = vpop.f32.mrb[0].mxu0
      %855 = vmatprep.mubr.f32.mxu0 0.0
      %856 = vmatmul.mubr.f32.gmra.mrb[0].mxu0 %v516
      %v857 = vpop.f32.mrb[0].mxu0
      %v858 = vadd.f32 %v368, %v857
      %v859 = vpop.f32.mrb[0].mxu0
      %860 = vmatprep.mubr.f32.mxu0 0.0
      %861 = vmatmul.mubr.f32.gmra.mrb[0].mxu0 %v519
      %v862 = vpop.f32.mrb[0].mxu0
      %v863 = vadd.f32 %v369, %v862
      %v864 = vpop.f32.mrb[0].mxu0
      %865 = vmatprep.mubr.f32.mxu0 0.0
      %866 = vmatmul.mubr.f32.gmra.mrb[0].mxu0 %v522
      %v867 = vpop.f32.mrb[0].mxu0
      %v868 = vadd.f32 %v370, %v867
      %v869 = vpop.f32.mrb[0].mxu0
      %870 = vmatprep.mubr.f32.mxu0 0.0
      %871 = vmatmul.mubr.f32.gmra.mrb[0].mxu0 %v525
      %v872 = vpop.f32.mrb[0].mxu0
      %v873 = vadd.f32 %v371, %v872
      %v874 = vpop.f32.mrb[0].mxu0
      %875 = vmatprep.mubr.f32.mxu0 0.0
      %876 = vmatmul.mubr.f32.gmra.mrb[0].mxu0 %v528
      %v877 = vpop.f32.mrb[0].mxu0
      %v878 = vadd.f32 %v372, %v877
      %v879 = vpop.f32.mrb[0].mxu0
      %880 = vmatprep.mubr.f32.mxu0 0.0
      %881 = vmatmul.mubr.f32.gmra.mrb[0].mxu0 %v531
      %v882 = vpop.f32.mrb[0].mxu0
      %v883 = vadd.f32 %v373, %v882
      %v884 = vpop.f32.mrb[0].mxu0
      %885 = vmatprep.mubr.f32.mxu0 0.0
      %886 = vmatmul.mubr.f32.gmra.mrb[0].mxu0 %v534
      %v887 = vpop.f32.mrb[0].mxu0
      %v888 = vadd.f32 %v374, %v887
      %v889 = vpop.f32.mrb[0].mxu0
      %890 = vmatprep.mubr.f32.mxu0 0.0
      %891 = vmatmul.mubr.f32.gmra.mrb[0].mxu0 %v537
      %v892 = vpop.f32.mrb[0].mxu0
      %v893 = vadd.f32 %v375, %v892
      %v894 = vpop.f32.mrb[0].mxu0
      %895 = vmatprep.mubr.f32.mxu0 0.0
      %896 = vmatmul.mubr.f32.gmra.mrb[0].mxu0 %v540
      %v897 = vpop.f32.mrb[0].mxu0
      %v898 = vadd.f32 %v376, %v897
      %v899 = vpop.f32.mrb[0].mxu0
      %900 = vmatprep.mubr.f32.mxu0 0.0
      %901 = vmatmul.mubr.f32.gmra.mrb[0].mxu0 %v543
      %v902 = vpop.f32.mrb[0].mxu0
      %v903 = vadd.f32 %v377, %v902
      %v904 = vpop.f32.mrb[0].mxu0
      %905 = vmatprep.mubr.f32.mxu0 0.0
      %906 = vmatmul.mubr.f32.gmra.mrb[0].mxu0 %v546
      %v907 = vpop.f32.mrb[0].mxu0
      %v908 = vadd.f32 %v378, %v907
      %v909 = vpop.f32.mrb[0].mxu0
      %910 = vmatprep.mubr.f32.mxu0 0.0
      %911 = vmatmul.mubr.f32.gmra.mrb[0].mxu0 %v549
      %v912 = vpop.f32.mrb[0].mxu0
      %v913 = vadd.f32 %v379, %v912
      %v914 = vpop.f32.mrb[0].mxu0
      %915 = vmatprep.mubr.f32.mxu0 0.0
      %916 = vmatmul.mubr.f32.gmra.mrb[0].mxu0 %v552
      %v917 = vpop.f32.mrb[0].mxu0
      %v918 = vadd.f32 %v380, %v917
      %v919 = vpop.f32.mrb[0].mxu0
      %920 = vmatprep.mubr.f32.mxu0 0.0
      %921 = vmatmul.mubr.f32.gmra.mrb[0].mxu0 %v555
      %v922 = vpop.f32.mrb[0].mxu0
      %v923 = vadd.f32 %v381, %v922
      %v924 = vpop.f32.mrb[0].mxu0
      %925 = vmatprep.mubr.f32.mxu0 0.0
      %926 = vmatmul.mubr.f32.gmra.mrb[0].mxu0 %v558
      %v927 = vpop.f32.mrb[0].mxu0
      %v928 = vadd.f32 %v382, %v927
      %v929 = vpop.f32.mrb[0].mxu0
      %930 = vmatprep.mubr.f32.mxu0 0.0
      %931 = vmatmul.mubr.f32.gmra.mrb[0].mxu0 %v561
      %v932 = vpop.f32.mrb[0].mxu0
      %v933 = vadd.f32 %v383, %v932
      %v934 = vpop.f32.mrb[0].mxu0
      %935 = vmatprep.mubr.f32.mxu0 0.0
      %936 = vmatmul.mubr.f32.gmra.mrb[0].mxu0 %v564
      %v937 = vpop.f32.mrb[0].mxu0
      %v938 = vadd.f32 %v384, %v937
      %v939 = vpop.f32.mrb[0].mxu0
      %940 = vmatprep.mubr.f32.mxu0 0.0
      %941 = vmatmul.mubr.f32.gmra.mrb[0].mxu0 %v567
      %v942 = vpop.f32.mrb[0].mxu0
      %v943 = vadd.f32 %v385, %v942
      %v944 = vpop.f32.mrb[0].mxu0
      %945 = vmatprep.mubr.f32.mxu0 0.0
      %946 = vmatmul.mubr.f32.gmra.mrb[0].mxu0 %v570
      %v947 = vpop.f32.mrb[0].mxu0
      %v948 = vadd.f32 %v386, %v947
      %v949 = vpop.f32.mrb[0].mxu0
      %950 = vmatprep.mubr.f32.mxu0 0.0
      %951 = vmatmul.mubr.f32.gmra.mrb[0].mxu0 %v573
      %v952 = vpop.f32.mrb[0].mxu0
      %v953 = vadd.f32 %v387, %v952
      %v954 = vpop.f32.mrb[0].mxu0
      %955 = vmatprep.mubr.f32.mxu0 0.0
      %956 = vmatmul.mubr.f32.gmra.mrb[0].mxu0 %v576
      %v957 = vpop.f32.mrb[0].mxu0
      %v958 = vadd.f32 %v388, %v957
      %v959 = vpop.f32.mrb[0].mxu0
      %960 = vmatprep.mubr.f32.mxu0 0.0
      %961 = vmatmul.mubr.f32.gmra.mrb[0].mxu0 %v579
      %v962 = vpop.f32.mrb[0].mxu0
      %v963 = vadd.f32 %v389, %v962
      %v964 = vpop.f32.mrb[0].mxu0
      %965 = vmatprep.mubr.f32.mxu0 0.0
      %966 = vmatmul.mubr.f32.gmra.mrb[0].mxu0 %v582
      %v967 = vpop.f32.mrb[0].mxu0
      %v968 = vadd.f32 %v390, %v967
      %v969 = vpop.f32.mrb[0].mxu0
      %970 = vmatprep.mubr.f32.mxu0 0.0
      %971 = vmatmul.mubr.f32.gmra.mrb[0].mxu0 %v585
      %v972 = vpop.f32.mrb[0].mxu0
      %v973 = vadd.f32 %v391, %v972
      %v974 = vpop.f32.mrb[0].mxu0
      %975 = vmatprep.mubr.f32.mxu0 0.0
      %976 = vmatmul.mubr.f32.gmra.mrb[0].mxu0 %v588
      %v977 = vpop.f32.mrb[0].mxu0
      %v978 = vadd.f32 %v392, %v977
      %v979 = vpop.f32.mrb[0].mxu0
      %980 = vmatprep.mubr.f32.mxu0 0.0
      %981 = vmatmul.mubr.f32.gmra.mrb[0].mxu0 %v591
      %v982 = vpop.f32.mrb[0].mxu0
      %v983 = vadd.f32 %v393, %v982
      %v984 = vpop.f32.mrb[0].mxu0
      %985 = vmatprep.mubr.f32.mxu0 0.0
      %986 = vmatmul.mubr.f32.gmra.mrb[0].mxu0 %v594
      %v987 = vpop.f32.mrb[0].mxu0
      %v988 = vadd.f32 %v394, %v987
      %v989 = vpop.f32.mrb[0].mxu0
      %990 = vmatprep.mubr.f32.mxu0 0.0
      %991 = vmatmul.mubr.f32.gmra.mrb[0].mxu0 %v597
      %v992 = vpop.f32.mrb[0].mxu0
      %v993 = vadd.f32 %v395, %v992
      %v994 = vpop.f32.mrb[0].mxu0
      %995 = vmatprep.mubr.f32.mxu0 0.0
      %996 = vmatmul.mubr.f32.gmra.mrb[0].mxu0 %v600
      %v997 = vpop.f32.mrb[0].mxu0
      %v998 = vadd.f32 %v396, %v997
      %v999 = vpop.f32.mrb[0].mxu0
      %1000 = vdwg.mxu0
      %v1001 = vxor.u32 %v673, 2147483648
      %v1002 = vxor.u32 %v678, 2147483648
      %v1003 = vxor.u32 %v683, 2147483648
      %v1004 = vxor.u32 %v688, 2147483648
      %v1005 = vxor.u32 %v693, 2147483648
      %v1006 = vxor.u32 %v698, 2147483648
      %v1007 = vxor.u32 %v703, 2147483648
      %v1008 = vxor.u32 %v708, 2147483648
      %v1009 = vxor.u32 %v713, 2147483648
      %v1010 = vxor.u32 %v718, 2147483648
      %v1011 = vxor.u32 %v723, 2147483648
      %v1012 = vxor.u32 %v728, 2147483648
      %v1013 = vxor.u32 %v733, 2147483648
      %v1014 = vxor.u32 %v738, 2147483648
      %v1015 = vxor.u32 %v743, 2147483648
      %v1016 = vxor.u32 %v748, 2147483648
      %v1017 = vxor.u32 %v753, 2147483648
      %v1018 = vxor.u32 %v758, 2147483648
      %v1019 = vxor.u32 %v763, 2147483648
      %v1020 = vxor.u32 %v768, 2147483648
      %v1021 = vxor.u32 %v773, 2147483648
      %v1022 = vxor.u32 %v778, 2147483648
      %v1023 = vxor.u32 %v783, 2147483648
      %v1024 = vxor.u32 %v788, 2147483648
      %v1025 = vxor.u32 %v793, 2147483648
      %v1026 = vxor.u32 %v798, 2147483648
      %v1027 = vxor.u32 %v803, 2147483648
      %v1028 = vxor.u32 %v808, 2147483648
      %v1029 = vxor.u32 %v813, 2147483648
      %v1030 = vxor.u32 %v818, 2147483648
      %v1031 = vxor.u32 %v823, 2147483648
      %v1032 = vxor.u32 %v828, 2147483648
      %v1033 = vxor.u32 %v833, 2147483648
      %v1034 = vxor.u32 %v838, 2147483648
      %v1035 = vxor.u32 %v843, 2147483648
      %v1036 = vxor.u32 %v848, 2147483648
      %v1037 = vxor.u32 %v853, 2147483648
      %v1038 = vxor.u32 %v858, 2147483648
      %v1039 = vxor.u32 %v863, 2147483648
      %v1040 = vxor.u32 %v868, 2147483648
      %v1041 = vxor.u32 %v873, 2147483648
      %v1042 = vxor.u32 %v878, 2147483648
      %v1043 = vxor.u32 %v883, 2147483648
      %v1044 = vxor.u32 %v888, 2147483648
      %v1045 = vxor.u32 %v893, 2147483648
      %v1046 = vxor.u32 %v898, 2147483648
      %v1047 = vxor.u32 %v903, 2147483648
      %v1048 = vxor.u32 %v908, 2147483648
      %v1049 = vxor.u32 %v913, 2147483648
      %v1050 = vxor.u32 %v918, 2147483648
      %v1051 = vxor.u32 %v923, 2147483648
      %v1052 = vxor.u32 %v928, 2147483648
      %v1053 = vxor.u32 %v933, 2147483648
      %v1054 = vxor.u32 %v938, 2147483648
      %v1055 = vxor.u32 %v943, 2147483648
      %v1056 = vxor.u32 %v948, 2147483648
      %v1057 = vxor.u32 %v953, 2147483648
      %v1058 = vxor.u32 %v958, 2147483648
      %v1059 = vxor.u32 %v963, 2147483648
      %v1060 = vxor.u32 %v968, 2147483648
      %v1061 = vxor.u32 %v973, 2147483648
      %v1062 = vxor.u32 %v978, 2147483648
      %v1063 = vxor.u32 %v983, 2147483648
      %v1064 = vxor.u32 %v988, 2147483648
      %v1065 = vxor.u32 %v993, 2147483648
      %v1066 = vxor.u32 %v998, 2147483648
      %v1067 = vmul.f32 %v1001, 1.442695
      %v1068 = vpow.pop %v1067
      %v1069 = vmul.f32 %v1002, 1.442695
      %v1070 = vpow.pop %v1069
      %v1071 = vmul.f32 %v1003, 1.442695
      %v1072 = vpow.pop %v1071
      %v1073 = vmul.f32 %v1004, 1.442695
      %v1074 = vpow.pop %v1073
      %v1075 = vmul.f32 %v1005, 1.442695
      %v1076 = vpow.pop %v1075
      %v1077 = vmul.f32 %v1006, 1.442695
      %v1078 = vpow.pop %v1077
      %v1079 = vmul.f32 %v1007, 1.442695
      %v1080 = vpow.pop %v1079
      %v1081 = vmul.f32 %v1008, 1.442695
      %v1082 = vpow.pop %v1081
      %v1083 = vmul.f32 %v1009, 1.442695
      %v1084 = vpow.pop %v1083
      %v1085 = vmul.f32 %v1010, 1.442695
      %v1086 = vpow.pop %v1085
      %v1087 = vmul.f32 %v1011, 1.442695
      %v1088 = vpow.pop %v1087
      %v1089 = vmul.f32 %v1012, 1.442695
      %v1090 = vpow.pop %v1089
      %v1091 = vmul.f32 %v1013, 1.442695
      %v1092 = vpow.pop %v1091
      %v1093 = vmul.f32 %v1014, 1.442695
      %v1094 = vpow.pop %v1093
      %v1095 = vmul.f32 %v1015, 1.442695
      %v1096 = vpow.pop %v1095
      %v1097 = vmul.f32 %v1016, 1.442695
      %v1098 = vpow.pop %v1097
      %v1099 = vmul.f32 %v1017, 1.442695
      %v1100 = vpow.pop %v1099
      %v1101 = vmul.f32 %v1018, 1.442695
      %v1102 = vpow.pop %v1101
      %v1103 = vmul.f32 %v1019, 1.442695
      %v1104 = vpow.pop %v1103
      %v1105 = vmul.f32 %v1020, 1.442695
      %v1106 = vpow.pop %v1105
      %v1107 = vmul.f32 %v1021, 1.442695
      %v1108 = vpow.pop %v1107
      %v1109 = vmul.f32 %v1022, 1.442695
      %v1110 = vpow.pop %v1109
      %v1111 = vmul.f32 %v1023, 1.442695
      %v1112 = vpow.pop %v1111
      %v1113 = vmul.f32 %v1024, 1.442695
      %v1114 = vpow.pop %v1113
      %v1115 = vmul.f32 %v1025, 1.442695
      %v1116 = vpow.pop %v1115
      %v1117 = vmul.f32 %v1026, 1.442695
      %v1118 = vpow.pop %v1117
      %v1119 = vmul.f32 %v1027, 1.442695
      %v1120 = vpow.pop %v1119
      %v1121 = vmul.f32 %v1028, 1.442695
      %v1122 = vpow.pop %v1121
      %v1123 = vmul.f32 %v1029, 1.442695
      %v1124 = vpow.pop %v1123
      %v1125 = vmul.f32 %v1030, 1.442695
      %v1126 = vpow.pop %v1125
      %v1127 = vmul.f32 %v1031, 1.442695
      %v1128 = vpow.pop %v1127
      %v1129 = vmul.f32 %v1032, 1.442695
      %v1130 = vpow.pop %v1129
      %v1131 = vmul.f32 %v1033, 1.442695
      %v1132 = vpow.pop %v1131
      %v1133 = vmul.f32 %v1034, 1.442695
      %v1134 = vpow.pop %v1133
      %v1135 = vmul.f32 %v1035, 1.442695
      %v1136 = vpow.pop %v1135
      %v1137 = vmul.f32 %v1036, 1.442695
      %v1138 = vpow.pop %v1137
      %v1139 = vmul.f32 %v1037, 1.442695
      %v1140 = vpow.pop %v1139
      %v1141 = vmul.f32 %v1038, 1.442695
      %v1142 = vpow.pop %v1141
      %v1143 = vmul.f32 %v1039, 1.442695
      %v1144 = vpow.pop %v1143
      %v1145 = vmul.f32 %v1040, 1.442695
      %v1146 = vpow.pop %v1145
      %v1147 = vmul.f32 %v1041, 1.442695
      %v1148 = vpow.pop %v1147
      %v1149 = vmul.f32 %v1042, 1.442695
      %v1150 = vpow.pop %v1149
      %v1151 = vmul.f32 %v1043, 1.442695
      %v1152 = vpow.pop %v1151
      %v1153 = vmul.f32 %v1044, 1.442695
      %v1154 = vpow.pop %v1153
      %v1155 = vmul.f32 %v1045, 1.442695
      %v1156 = vpow.pop %v1155
      %v1157 = vmul.f32 %v1046, 1.442695
      %v1158 = vpow.pop %v1157
      %v1159 = vmul.f32 %v1047, 1.442695
      %v1160 = vpow.pop %v1159
      %v1161 = vmul.f32 %v1048, 1.442695
      %v1162 = vpow.pop %v1161
      %v1163 = vmul.f32 %v1049, 1.442695
      %v1164 = vpow.pop %v1163
      %v1165 = vmul.f32 %v1050, 1.442695
      %v1166 = vpow.pop %v1165
      %v1167 = vmul.f32 %v1051, 1.442695
      %v1168 = vpow.pop %v1167
      %v1169 = vmul.f32 %v1052, 1.442695
      %v1170 = vpow.pop %v1169
      %v1171 = vmul.f32 %v1053, 1.442695
      %v1172 = vpow.pop %v1171
      %v1173 = vmul.f32 %v1054, 1.442695
      %v1174 = vpow.pop %v1173
      %v1175 = vmul.f32 %v1055, 1.442695
      %v1176 = vpow.pop %v1175
      %v1177 = vmul.f32 %v1056, 1.442695
      %v1178 = vpow.pop %v1177
      %v1179 = vmul.f32 %v1057, 1.442695
      %v1180 = vpow.pop %v1179
      %v1181 = vmul.f32 %v1058, 1.442695
      %v1182 = vpow.pop %v1181
      %v1183 = vmul.f32 %v1059, 1.442695
      %v1184 = vpow.pop %v1183
      %v1185 = vmul.f32 %v1060, 1.442695
      %v1186 = vpow.pop %v1185
      %v1187 = vmul.f32 %v1061, 1.442695
      %v1188 = vpow.pop %v1187
      %v1189 = vmul.f32 %v1062, 1.442695
      %v1190 = vpow.pop %v1189
      %v1191 = vmul.f32 %v1063, 1.442695
      %v1192 = vpow.pop %v1191
      %v1193 = vmul.f32 %v1064, 1.442695
      %v1194 = vpow.pop %v1193
      %v1195 = vmul.f32 %v1065, 1.442695
      %v1196 = vpow.pop %v1195
      %v1197 = vmul.f32 %v1066, 1.442695
      %v1198 = vpow.pop %v1197
      %v1199 = vadd.f32 %v1068, 1.0
      %v1200 = vadd.f32 %v1070, 1.0
      %v1201 = vadd.f32 %v1072, 1.0
      %v1202 = vadd.f32 %v1074, 1.0
      %v1203 = vadd.f32 %v1076, 1.0
      %v1204 = vadd.f32 %v1078, 1.0
      %v1205 = vadd.f32 %v1080, 1.0
      %v1206 = vadd.f32 %v1082, 1.0
      %v1207 = vadd.f32 %v1084, 1.0
      %v1208 = vadd.f32 %v1086, 1.0
      %v1209 = vadd.f32 %v1088, 1.0
      %v1210 = vadd.f32 %v1090, 1.0
      %v1211 = vadd.f32 %v1092, 1.0
      %v1212 = vadd.f32 %v1094, 1.0
      %v1213 = vadd.f32 %v1096, 1.0
      %v1214 = vadd.f32 %v1098, 1.0
      %v1215 = vadd.f32 %v1100, 1.0
      %v1216 = vadd.f32 %v1102, 1.0
      %v1217 = vadd.f32 %v1104, 1.0
      %v1218 = vadd.f32 %v1106, 1.0
      %v1219 = vadd.f32 %v1108, 1.0
      %v1220 = vadd.f32 %v1110, 1.0
      %v1221 = vadd.f32 %v1112, 1.0
      %v1222 = vadd.f32 %v1114, 1.0
      %v1223 = vadd.f32 %v1116, 1.0
      %v1224 = vadd.f32 %v1118, 1.0
      %v1225 = vadd.f32 %v1120, 1.0
      %v1226 = vadd.f32 %v1122, 1.0
      %v1227 = vadd.f32 %v1124, 1.0
      %v1228 = vadd.f32 %v1126, 1.0
      %v1229 = vadd.f32 %v1128, 1.0
      %v1230 = vadd.f32 %v1130, 1.0
      %v1231 = vadd.f32 %v1132, 1.0
      %v1232 = vadd.f32 %v1134, 1.0
      %v1233 = vadd.f32 %v1136, 1.0
      %v1234 = vadd.f32 %v1138, 1.0
      %v1235 = vadd.f32 %v1140, 1.0
      %v1236 = vadd.f32 %v1142, 1.0
      %v1237 = vadd.f32 %v1144, 1.0
      %v1238 = vadd.f32 %v1146, 1.0
      %v1239 = vadd.f32 %v1148, 1.0
      %v1240 = vadd.f32 %v1150, 1.0
      %v1241 = vadd.f32 %v1152, 1.0
      %v1242 = vadd.f32 %v1154, 1.0
      %v1243 = vadd.f32 %v1156, 1.0
      %v1244 = vadd.f32 %v1158, 1.0
      %v1245 = vadd.f32 %v1160, 1.0
      %v1246 = vadd.f32 %v1162, 1.0
      %v1247 = vadd.f32 %v1164, 1.0
      %v1248 = vadd.f32 %v1166, 1.0
      %v1249 = vadd.f32 %v1168, 1.0
      %v1250 = vadd.f32 %v1170, 1.0
      %v1251 = vadd.f32 %v1172, 1.0
      %v1252 = vadd.f32 %v1174, 1.0
      %v1253 = vadd.f32 %v1176, 1.0
      %v1254 = vadd.f32 %v1178, 1.0
      %v1255 = vadd.f32 %v1180, 1.0
      %v1256 = vadd.f32 %v1182, 1.0
      %v1257 = vadd.f32 %v1184, 1.0
      %v1258 = vadd.f32 %v1186, 1.0
      %v1259 = vadd.f32 %v1188, 1.0
      %v1260 = vadd.f32 %v1190, 1.0
      %v1261 = vadd.f32 %v1192, 1.0
      %v1262 = vadd.f32 %v1194, 1.0
      %v1263 = vadd.f32 %v1196, 1.0
      %v1264 = vadd.f32 %v1198, 1.0
      %v1265 = vrcp.pop %v1199
      %v1266 = vmul.f32 1.0, %v1265
      %v1267 = vrcp.pop %v1200
      %v1268 = vmul.f32 1.0, %v1267
      %v1269 = vrcp.pop %v1201
      %v1270 = vmul.f32 1.0, %v1269
      %v1271 = vrcp.pop %v1202
      %v1272 = vmul.f32 1.0, %v1271
      %v1273 = vrcp.pop %v1203
      %v1274 = vmul.f32 1.0, %v1273
      %v1275 = vrcp.pop %v1204
      %v1276 = vmul.f32 1.0, %v1275
      %v1277 = vrcp.pop %v1205
      %v1278 = vmul.f32 1.0, %v1277
      %v1279 = vrcp.pop %v1206
      %v1280 = vmul.f32 1.0, %v1279
      %v1281 = vrcp.pop %v1207
      %v1282 = vmul.f32 1.0, %v1281
      %v1283 = vrcp.pop %v1208
      %v1284 = vmul.f32 1.0, %v1283
      %v1285 = vrcp.pop %v1209
      %v1286 = vmul.f32 1.0, %v1285
      %v1287 = vrcp.pop %v1210
      %v1288 = vmul.f32 1.0, %v1287
      %v1289 = vrcp.pop %v1211
      %v1290 = vmul.f32 1.0, %v1289
      %v1291 = vrcp.pop %v1212
      %v1292 = vmul.f32 1.0, %v1291
      %v1293 = vrcp.pop %v1213
      %v1294 = vmul.f32 1.0, %v1293
      %v1295 = vrcp.pop %v1214
      %v1296 = vmul.f32 1.0, %v1295
      %v1297 = vrcp.pop %v1215
      %v1298 = vmul.f32 1.0, %v1297
      %v1299 = vrcp.pop %v1216
      %v1300 = vmul.f32 1.0, %v1299
      %v1301 = vrcp.pop %v1217
      %v1302 = vmul.f32 1.0, %v1301
      %v1303 = vrcp.pop %v1218
      %v1304 = vmul.f32 1.0, %v1303
      %v1305 = vrcp.pop %v1219
      %v1306 = vmul.f32 1.0, %v1305
      %v1307 = vrcp.pop %v1220
      %v1308 = vmul.f32 1.0, %v1307
      %v1309 = vrcp.pop %v1221
      %v1310 = vmul.f32 1.0, %v1309
      %v1311 = vrcp.pop %v1222
      %v1312 = vmul.f32 1.0, %v1311
      %v1313 = vrcp.pop %v1223
      %v1314 = vmul.f32 1.0, %v1313
      %v1315 = vrcp.pop %v1224
      %v1316 = vmul.f32 1.0, %v1315
      %v1317 = vrcp.pop %v1225
      %v1318 = vmul.f32 1.0, %v1317
      %v1319 = vrcp.pop %v1226
      %v1320 = vmul.f32 1.0, %v1319
      %v1321 = vrcp.pop %v1227
      %v1322 = vmul.f32 1.0, %v1321
      %v1323 = vrcp.pop %v1228
      %v1324 = vmul.f32 1.0, %v1323
      %v1325 = vrcp.pop %v1229
      %v1326 = vmul.f32 1.0, %v1325
      %v1327 = vrcp.pop %v1230
      %v1328 = vmul.f32 1.0, %v1327
      %v1329 = vrcp.pop %v1231
      %v1330 = vmul.f32 1.0, %v1329
      %v1331 = vrcp.pop %v1232
      %v1332 = vmul.f32 1.0, %v1331
      %v1333 = vrcp.pop %v1233
      %v1334 = vmul.f32 1.0, %v1333
      %v1335 = vrcp.pop %v1234
      %v1336 = vmul.f32 1.0, %v1335
      %v1337 = vrcp.pop %v1235
      %v1338 = vmul.f32 1.0, %v1337
      %v1339 = vrcp.pop %v1236
      %v1340 = vmul.f32 1.0, %v1339
      %v1341 = vrcp.pop %v1237
      %v1342 = vmul.f32 1.0, %v1341
      %v1343 = vrcp.pop %v1238
      %v1344 = vmul.f32 1.0, %v1343
      %v1345 = vrcp.pop %v1239
      %v1346 = vmul.f32 1.0, %v1345
      %v1347 = vrcp.pop %v1240
      %v1348 = vmul.f32 1.0, %v1347
      %v1349 = vrcp.pop %v1241
      %v1350 = vmul.f32 1.0, %v1349
      %v1351 = vrcp.pop %v1242
      %v1352 = vmul.f32 1.0, %v1351
      %v1353 = vrcp.pop %v1243
      %v1354 = vmul.f32 1.0, %v1353
      %v1355 = vrcp.pop %v1244
      %v1356 = vmul.f32 1.0, %v1355
      %v1357 = vrcp.pop %v1245
      %v1358 = vmul.f32 1.0, %v1357
      %v1359 = vrcp.pop %v1246
      %v1360 = vmul.f32 1.0, %v1359
      %v1361 = vrcp.pop %v1247
      %v1362 = vmul.f32 1.0, %v1361
      %v1363 = vrcp.pop %v1248
      %v1364 = vmul.f32 1.0, %v1363
      %v1365 = vrcp.pop %v1249
      %v1366 = vmul.f32 1.0, %v1365
      %v1367 = vrcp.pop %v1250
      %v1368 = vmul.f32 1.0, %v1367
      %v1369 = vrcp.pop %v1251
      %v1370 = vmul.f32 1.0, %v1369
      %v1371 = vrcp.pop %v1252
      %v1372 = vmul.f32 1.0, %v1371
      %v1373 = vrcp.pop %v1253
      %v1374 = vmul.f32 1.0, %v1373
      %v1375 = vrcp.pop %v1254
      %v1376 = vmul.f32 1.0, %v1375
      %v1377 = vrcp.pop %v1255
      %v1378 = vmul.f32 1.0, %v1377
      %v1379 = vrcp.pop %v1256
      %v1380 = vmul.f32 1.0, %v1379
      %v1381 = vrcp.pop %v1257
      %v1382 = vmul.f32 1.0, %v1381
      %v1383 = vrcp.pop %v1258
      %v1384 = vmul.f32 1.0, %v1383
      %v1385 = vrcp.pop %v1259
      %v1386 = vmul.f32 1.0, %v1385
      %v1387 = vrcp.pop %v1260
      %v1388 = vmul.f32 1.0, %v1387
      %v1389 = vrcp.pop %v1261
      %v1390 = vmul.f32 1.0, %v1389
      %v1391 = vrcp.pop %v1262
      %v1392 = vmul.f32 1.0, %v1391
      %v1393 = vrcp.pop %v1263
      %v1394 = vmul.f32 1.0, %v1393
      %v1395 = vrcp.pop %v1264
      %v1396 = vmul.f32 1.0, %v1395
      %v1397 = vld [vmem:[%s249] sm:$0xff]
      %v1398 = vld [vmem:[%s249 + $0x8] sm:$0xff]
      %v1399 = vld [vmem:[%s249 + $0x10] sm:$0xff]
      %v1400 = vld [vmem:[%s249 + $0x18] sm:$0xff]
      %v1401 = vld [vmem:[%s249 + $0x20] sm:$0xff]
      %v1402 = vld [vmem:[%s249 + $0x28] sm:$0xff]
      %v1403 = vld [vmem:[%s249 + $0x30] sm:$0xff]
      %v1404 = vld [vmem:[%s249 + $0x38] sm:$0xff]
      %v1405 = vld [vmem:[%s249 + $0x40] sm:$0xff]
      %v1406 = vld [vmem:[%s249 + $0x48] sm:$0xff]
      %v1407 = vld [vmem:[%s249 + $0x50] sm:$0xff]
      %v1408 = vld [vmem:[%s249 + $0x58] sm:$0xff]
      %v1409 = vld [vmem:[%s249 + $0x60] sm:$0xff]
      %v1410 = vld [vmem:[%s249 + $0x68] sm:$0xff]
      %v1411 = vld [vmem:[%s249 + $0x70] sm:$0xff]
      %v1412 = vld [vmem:[%s249 + $0x78] sm:$0xff]
      %v1413 = vld [vmem:[%s249 + $0x80] sm:$0xff]
      %v1414 = vld [vmem:[%s249 + $0x88] sm:$0xff]
      %v1415 = vld [vmem:[%s249 + $0x90] sm:$0xff]
      %v1416 = vld [vmem:[%s249 + $0x98] sm:$0xff]
      %v1417 = vld [vmem:[%s249 + $0xa0] sm:$0xff]
      %v1418 = vld [vmem:[%s249 + $0xa8] sm:$0xff]
      %v1419 = vld [vmem:[%s249 + $0xb0] sm:$0xff]
      %v1420 = vld [vmem:[%s249 + $0xb8] sm:$0xff]
      %v1421 = vld [vmem:[%s249 + $0xc0] sm:$0xff]
      %v1422 = vld [vmem:[%s249 + $0xc8] sm:$0xff]
      %v1423 = vld [vmem:[%s249 + $0xd0] sm:$0xff]
      %v1424 = vld [vmem:[%s249 + $0xd8] sm:$0xff]
      %v1425 = vld [vmem:[%s249 + $0xe0] sm:$0xff]
      %v1426 = vld [vmem:[%s249 + $0xe8] sm:$0xff]
      %v1427 = vld [vmem:[%s249 + $0xf0] sm:$0xff]
      %v1428 = vld [vmem:[%s249 + $0xf8] sm:$0xff]
      %v1429 = vld [vmem:[%s249 + $0x100] sm:$0xff]
      %v1430 = vld [vmem:[%s249 + $0x108] sm:$0xff]
      %v1431 = vld [vmem:[%s249 + $0x110] sm:$0xff]
      %v1432 = vld [vmem:[%s249 + $0x118] sm:$0xff]
      %v1433 = vld [vmem:[%s249 + $0x120] sm:$0xff]
      %v1434 = vld [vmem:[%s249 + $0x128] sm:$0xff]
      %v1435 = vld [vmem:[%s249 + $0x130] sm:$0xff]
      %v1436 = vld [vmem:[%s249 + $0x138] sm:$0xff]
      %v1437 = vld [vmem:[%s249 + $0x140] sm:$0xff]
      %v1438 = vld [vmem:[%s249 + $0x148] sm:$0xff]
      %v1439 = vld [vmem:[%s249 + $0x150] sm:$0xff]
      %v1440 = vld [vmem:[%s249 + $0x158] sm:$0xff]
      %v1441 = vld [vmem:[%s249 + $0x160] sm:$0xff]
      %v1442 = vld [vmem:[%s249 + $0x168] sm:$0xff]
      %v1443 = vld [vmem:[%s249 + $0x170] sm:$0xff]
      %v1444 = vld [vmem:[%s249 + $0x178] sm:$0xff]
      %v1445 = vld [vmem:[%s249 + $0x180] sm:$0xff]
      %v1446 = vld [vmem:[%s249 + $0x188] sm:$0xff]
      %v1447 = vld [vmem:[%s249 + $0x190] sm:$0xff]
      %v1448 = vld [vmem:[%s249 + $0x198] sm:$0xff]
      %v1449 = vld [vmem:[%s249 + $0x1a0] sm:$0xff]
      %v1450 = vld [vmem:[%s249 + $0x1a8] sm:$0xff]
      %v1451 = vld [vmem:[%s249 + $0x1b0] sm:$0xff]
      %v1452 = vld [vmem:[%s249 + $0x1b8] sm:$0xff]
      %v1453 = vld [vmem:[%s249 + $0x1c0] sm:$0xff]
      %v1454 = vld [vmem:[%s249 + $0x1c8] sm:$0xff]
      %v1455 = vld [vmem:[%s249 + $0x1d0] sm:$0xff]
      %v1456 = vld [vmem:[%s249 + $0x1d8] sm:$0xff]
      %v1457 = vld [vmem:[%s249 + $0x1e0] sm:$0xff]
      %v1458 = vld [vmem:[%s249 + $0x1e8] sm:$0xff]
      %v1459 = vld [vmem:[%s249 + $0x1f0] sm:$0xff]
      %v1460 = vld [vmem:[%s249 + $0x1f8] sm:$0xff]
      %v1461 = vld [vmem:[%s249 + $0x200] sm:$0xff]
      %v1462 = vld [vmem:[%s249 + $0x208] sm:$0xff]
      %v1463 = vld [vmem:[%s249 + $0x210] sm:$0xff]
      %v1464 = vld [vmem:[%s249 + $0x218] sm:$0xff]
      %v1465 = vld [vmem:[%s249 + $0x220] sm:$0xff]
      %v1466 = vld [vmem:[%s249 + $0x228] sm:$0xff]
      %v1467 = vld [vmem:[%s249 + $0x230] sm:$0xff]
      %v1468 = vld [vmem:[%s249 + $0x238] sm:$0xff]
      %v1469 = vld [vmem:[%s249 + $0x240] sm:$0xff]
      %v1470 = vld [vmem:[%s249 + $0x248] sm:$0xff]
      %v1471 = vld [vmem:[%s249 + $0x250] sm:$0xff]
      %v1472 = vld [vmem:[%s249 + $0x258] sm:$0xff]
      %v1473 = vld [vmem:[%s249 + $0x260] sm:$0xff]
      %v1474 = vld [vmem:[%s249 + $0x268] sm:$0xff]
      %v1475 = vld [vmem:[%s249 + $0x270] sm:$0xff]
      %v1476 = vld [vmem:[%s249 + $0x278] sm:$0xff]
      %v1477 = vld [vmem:[%s249 + $0x280] sm:$0xff]
      %v1478 = vld [vmem:[%s249 + $0x288] sm:$0xff]
      %v1479 = vld [vmem:[%s249 + $0x290] sm:$0xff]
      %v1480 = vld [vmem:[%s249 + $0x298] sm:$0xff]
      %v1481 = vld [vmem:[%s249 + $0x2a0] sm:$0xff]
      %v1482 = vld [vmem:[%s249 + $0x2a8] sm:$0xff]
      %v1483 = vld [vmem:[%s249 + $0x2b0] sm:$0xff]
      %v1484 = vld [vmem:[%s249 + $0x2b8] sm:$0xff]
      %v1485 = vld [vmem:[%s249 + $0x2c0] sm:$0xff]
      %v1486 = vld [vmem:[%s249 + $0x2c8] sm:$0xff]
      %v1487 = vld [vmem:[%s249 + $0x2d0] sm:$0xff]
      %v1488 = vld [vmem:[%s249 + $0x2d8] sm:$0xff]
      %v1489 = vld [vmem:[%s249 + $0x2e0] sm:$0xff]
      %v1490 = vld [vmem:[%s249 + $0x2e8] sm:$0xff]
      %v1491 = vld [vmem:[%s249 + $0x2f0] sm:$0xff]
      %v1492 = vld [vmem:[%s249 + $0x2f8] sm:$0xff]
      %v1493 = vld [vmem:[%s249 + $0x300] sm:$0xff]
      %v1494 = vld [vmem:[%s249 + $0x308] sm:$0xff]
      %v1495 = vld [vmem:[%s249 + $0x310] sm:$0xff]
      %v1496 = vld [vmem:[%s249 + $0x318] sm:$0xff]
      %v1497 = vld [vmem:[%s249 + $0x320] sm:$0xff]
      %v1498 = vld [vmem:[%s249 + $0x328] sm:$0xff]
      %v1499 = vld [vmem:[%s249 + $0x330] sm:$0xff]
      %v1500 = vld [vmem:[%s249 + $0x338] sm:$0xff]
      %v1501 = vld [vmem:[%s249 + $0x340] sm:$0xff]
      %v1502 = vld [vmem:[%s249 + $0x348] sm:$0xff]
      %v1503 = vld [vmem:[%s249 + $0x350] sm:$0xff]
      %v1504 = vld [vmem:[%s249 + $0x358] sm:$0xff]
      %v1505 = vld [vmem:[%s249 + $0x360] sm:$0xff]
      %v1506 = vld [vmem:[%s249 + $0x368] sm:$0xff]
      %v1507 = vld [vmem:[%s249 + $0x370] sm:$0xff]
      %v1508 = vld [vmem:[%s249 + $0x378] sm:$0xff]
      %v1509 = vld [vmem:[%s249 + $0x380] sm:$0xff]
      %v1510 = vld [vmem:[%s249 + $0x388] sm:$0xff]
      %v1511 = vld [vmem:[%s249 + $0x390] sm:$0xff]
      %v1512 = vld [vmem:[%s249 + $0x398] sm:$0xff]
      %v1513 = vld [vmem:[%s249 + $0x3a0] sm:$0xff]
      %v1514 = vld [vmem:[%s249 + $0x3a8] sm:$0xff]
      %v1515 = vld [vmem:[%s249 + $0x3b0] sm:$0xff]
      %v1516 = vld [vmem:[%s249 + $0x3b8] sm:$0xff]
      %v1517 = vld [vmem:[%s249 + $0x3c0] sm:$0xff]
      %v1518 = vld [vmem:[%s249 + $0x3c8] sm:$0xff]
      %v1519 = vld [vmem:[%s249 + $0x3d0] sm:$0xff]
      %v1520 = vld [vmem:[%s249 + $0x3d8] sm:$0xff]
      %v1521 = vld [vmem:[%s249 + $0x3e0] sm:$0xff]
      %v1522 = vld [vmem:[%s249 + $0x3e8] sm:$0xff]
      %v1523 = vld [vmem:[%s249 + $0x3f0] sm:$0xff]
      %v1524 = vld [vmem:[%s249 + $0x3f8] sm:$0xff]
      %v1525 = vld [vmem:[%s249 + $0x400] sm:$0xff]
      %v1526 = vld [vmem:[%s249 + $0x408] sm:$0xff]
      %v1527 = vld [vmem:[%s249 + $0x410] sm:$0xff]
      %v1528 = vld [vmem:[%s249 + $0x418] sm:$0xff]
      %1530 = vset.pattern.permute.xlu0 0
      %1531 = vperm.xlu0 %1530, %v1266
      %v1532 = vpop.permute.xlu0 %1531
      %1535 = vset.pattern.permute.xlu0 0
      %1536 = vperm.xlu0 %1535, %v1268
      %v1537 = vpop.permute.xlu0 %1536
      %1540 = vset.pattern.permute.xlu0 0
      %1541 = vperm.xlu0 %1540, %v1270
      %v1542 = vpop.permute.xlu0 %1541
      %1545 = vset.pattern.permute.xlu0 0
      %1546 = vperm.xlu0 %1545, %v1272
      %v1547 = vpop.permute.xlu0 %1546
      %1550 = vset.pattern.permute.xlu0 0
      %1551 = vperm.xlu0 %1550, %v1274
      %v1552 = vpop.permute.xlu0 %1551
      %1555 = vset.pattern.permute.xlu0 0
      %1556 = vperm.xlu0 %1555, %v1276
      %v1557 = vpop.permute.xlu0 %1556
      %1560 = vset.pattern.permute.xlu0 0
      %1561 = vperm.xlu0 %1560, %v1278
      %v1562 = vpop.permute.xlu0 %1561
      %1565 = vset.pattern.permute.xlu0 0
      %1566 = vperm.xlu0 %1565, %v1280
      %v1567 = vpop.permute.xlu0 %1566
      %1570 = vset.pattern.permute.xlu0 0
      %1571 = vperm.xlu0 %1570, %v1282
      %v1572 = vpop.permute.xlu0 %1571
      %1575 = vset.pattern.permute.xlu0 0
      %1576 = vperm.xlu0 %1575, %v1284
      %v1577 = vpop.permute.xlu0 %1576
      %1580 = vset.pattern.permute.xlu0 0
      %1581 = vperm.xlu0 %1580, %v1286
      %v1582 = vpop.permute.xlu0 %1581
      %1585 = vset.pattern.permute.xlu0 0
      %1586 = vperm.xlu0 %1585, %v1288
      %v1587 = vpop.permute.xlu0 %1586
      %1590 = vset.pattern.permute.xlu0 0
      %1591 = vperm.xlu0 %1590, %v1290
      %v1592 = vpop.permute.xlu0 %1591
      %1595 = vset.pattern.permute.xlu0 0
      %1596 = vperm.xlu0 %1595, %v1292
      %v1597 = vpop.permute.xlu0 %1596
      %1600 = vset.pattern.permute.xlu0 0
      %1601 = vperm.xlu0 %1600, %v1294
      %v1602 = vpop.permute.xlu0 %1601
      %1605 = vset.pattern.permute.xlu0 0
      %1606 = vperm.xlu0 %1605, %v1296
      %v1607 = vpop.permute.xlu0 %1606
      %1610 = vset.pattern.permute.xlu0 0
      %1611 = vperm.xlu0 %1610, %v1298
      %v1612 = vpop.permute.xlu0 %1611
      %1615 = vset.pattern.permute.xlu0 0
      %1616 = vperm.xlu0 %1615, %v1300
      %v1617 = vpop.permute.xlu0 %1616
      %1620 = vset.pattern.permute.xlu0 0
      %1621 = vperm.xlu0 %1620, %v1302
      %v1622 = vpop.permute.xlu0 %1621
      %1625 = vset.pattern.permute.xlu0 0
      %1626 = vperm.xlu0 %1625, %v1304
      %v1627 = vpop.permute.xlu0 %1626
      %1630 = vset.pattern.permute.xlu0 0
      %1631 = vperm.xlu0 %1630, %v1306
      %v1632 = vpop.permute.xlu0 %1631
      %1635 = vset.pattern.permute.xlu0 0
      %1636 = vperm.xlu0 %1635, %v1308
      %v1637 = vpop.permute.xlu0 %1636
      %1640 = vset.pattern.permute.xlu0 0
      %1641 = vperm.xlu0 %1640, %v1310
      %v1642 = vpop.permute.xlu0 %1641
      %1645 = vset.pattern.permute.xlu0 0
      %1646 = vperm.xlu0 %1645, %v1312
      %v1647 = vpop.permute.xlu0 %1646
      %1650 = vset.pattern.permute.xlu0 0
      %1651 = vperm.xlu0 %1650, %v1314
      %v1652 = vpop.permute.xlu0 %1651
      %1655 = vset.pattern.permute.xlu0 0
      %1656 = vperm.xlu0 %1655, %v1316
      %v1657 = vpop.permute.xlu0 %1656
      %1660 = vset.pattern.permute.xlu0 0
      %1661 = vperm.xlu0 %1660, %v1318
      %v1662 = vpop.permute.xlu0 %1661
      %1665 = vset.pattern.permute.xlu0 0
      %1666 = vperm.xlu0 %1665, %v1320
      %v1667 = vpop.permute.xlu0 %1666
      %1670 = vset.pattern.permute.xlu0 0
      %1671 = vperm.xlu0 %1670, %v1322
      %v1672 = vpop.permute.xlu0 %1671
      %1675 = vset.pattern.permute.xlu0 0
      %1676 = vperm.xlu0 %1675, %v1324
      %v1677 = vpop.permute.xlu0 %1676
      %1680 = vset.pattern.permute.xlu0 0
      %1681 = vperm.xlu0 %1680, %v1326
      %v1682 = vpop.permute.xlu0 %1681
      %1685 = vset.pattern.permute.xlu0 0
      %1686 = vperm.xlu0 %1685, %v1328
      %v1687 = vpop.permute.xlu0 %1686
      %1690 = vset.pattern.permute.xlu0 0
      %1691 = vperm.xlu0 %1690, %v1330
      %v1692 = vpop.permute.xlu0 %1691
      %1695 = vset.pattern.permute.xlu0 0
      %1696 = vperm.xlu0 %1695, %v1332
      %v1697 = vpop.permute.xlu0 %1696
      %1700 = vset.pattern.permute.xlu0 0
      %1701 = vperm.xlu0 %1700, %v1334
      %v1702 = vpop.permute.xlu0 %1701
      %1705 = vset.pattern.permute.xlu0 0
      %1706 = vperm.xlu0 %1705, %v1336
      %v1707 = vpop.permute.xlu0 %1706
      %1710 = vset.pattern.permute.xlu0 0
      %1711 = vperm.xlu0 %1710, %v1338
      %v1712 = vpop.permute.xlu0 %1711
      %1715 = vset.pattern.permute.xlu0 0
      %1716 = vperm.xlu0 %1715, %v1340
      %v1717 = vpop.permute.xlu0 %1716
      %1720 = vset.pattern.permute.xlu0 0
      %1721 = vperm.xlu0 %1720, %v1342
      %v1722 = vpop.permute.xlu0 %1721
      %1725 = vset.pattern.permute.xlu0 0
      %1726 = vperm.xlu0 %1725, %v1344
      %v1727 = vpop.permute.xlu0 %1726
      %1730 = vset.pattern.permute.xlu0 0
      %1731 = vperm.xlu0 %1730, %v1346
      %v1732 = vpop.permute.xlu0 %1731
      %1735 = vset.pattern.permute.xlu0 0
      %1736 = vperm.xlu0 %1735, %v1348
      %v1737 = vpop.permute.xlu0 %1736
      %1740 = vset.pattern.permute.xlu0 0
      %1741 = vperm.xlu0 %1740, %v1350
      %v1742 = vpop.permute.xlu0 %1741
      %1745 = vset.pattern.permute.xlu0 0
      %1746 = vperm.xlu0 %1745, %v1352
      %v1747 = vpop.permute.xlu0 %1746
      %1750 = vset.pattern.permute.xlu0 0
      %1751 = vperm.xlu0 %1750, %v1354
      %v1752 = vpop.permute.xlu0 %1751
      %1755 = vset.pattern.permute.xlu0 0
      %1756 = vperm.xlu0 %1755, %v1356
      %v1757 = vpop.permute.xlu0 %1756
      %1760 = vset.pattern.permute.xlu0 0
      %1761 = vperm.xlu0 %1760, %v1358
      %v1762 = vpop.permute.xlu0 %1761
      %1765 = vset.pattern.permute.xlu0 0
      %1766 = vperm.xlu0 %1765, %v1360
      %v1767 = vpop.permute.xlu0 %1766
      %1770 = vset.pattern.permute.xlu0 0
      %1771 = vperm.xlu0 %1770, %v1362
      %v1772 = vpop.permute.xlu0 %1771
      %1775 = vset.pattern.permute.xlu0 0
      %1776 = vperm.xlu0 %1775, %v1364
      %v1777 = vpop.permute.xlu0 %1776
      %1780 = vset.pattern.permute.xlu0 0
      %1781 = vperm.xlu0 %1780, %v1366
      %v1782 = vpop.permute.xlu0 %1781
      %1785 = vset.pattern.permute.xlu0 0
      %1786 = vperm.xlu0 %1785, %v1368
      %v1787 = vpop.permute.xlu0 %1786
      %1790 = vset.pattern.permute.xlu0 0
      %1791 = vperm.xlu0 %1790, %v1370
      %v1792 = vpop.permute.xlu0 %1791
      %1795 = vset.pattern.permute.xlu0 0
      %1796 = vperm.xlu0 %1795, %v1372
      %v1797 = vpop.permute.xlu0 %1796
      %1800 = vset.pattern.permute.xlu0 0
      %1801 = vperm.xlu0 %1800, %v1374
      %v1802 = vpop.permute.xlu0 %1801
      %1805 = vset.pattern.permute.xlu0 0
      %1806 = vperm.xlu0 %1805, %v1376
      %v1807 = vpop.permute.xlu0 %1806
      %1810 = vset.pattern.permute.xlu0 0
      %1811 = vperm.xlu0 %1810, %v1378
      %v1812 = vpop.permute.xlu0 %1811
      %1815 = vset.pattern.permute.xlu0 0
      %1816 = vperm.xlu0 %1815, %v1380
      %v1817 = vpop.permute.xlu0 %1816
      %1820 = vset.pattern.permute.xlu0 0
      %1821 = vperm.xlu0 %1820, %v1382
      %v1822 = vpop.permute.xlu0 %1821
      %1825 = vset.pattern.permute.xlu0 0
      %1826 = vperm.xlu0 %1825, %v1384
      %v1827 = vpop.permute.xlu0 %1826
      %1830 = vset.pattern.permute.xlu0 0
      %1831 = vperm.xlu0 %1830, %v1386
      %v1832 = vpop.permute.xlu0 %1831
      %1835 = vset.pattern.permute.xlu0 0
      %1836 = vperm.xlu0 %1835, %v1388
      %v1837 = vpop.permute.xlu0 %1836
      %1840 = vset.pattern.permute.xlu0 0
      %1841 = vperm.xlu0 %1840, %v1390
      %v1842 = vpop.permute.xlu0 %1841
      %1845 = vset.pattern.permute.xlu0 0
      %1846 = vperm.xlu0 %1845, %v1392
      %v1847 = vpop.permute.xlu0 %1846
      %1850 = vset.pattern.permute.xlu0 0
      %1851 = vperm.xlu0 %1850, %v1394
      %v1852 = vpop.permute.xlu0 %1851
      %1855 = vset.pattern.permute.xlu0 0
      %1856 = vperm.xlu0 %1855, %v1396
      %v1857 = vpop.permute.xlu0 %1856
      %v1859 = vmul.f32 %v1397, %v1532
      %v1860 = vmul.f32 %v1398, %v1532
      %v1861 = vmul.f32 %v1399, %v1537
      %v1862 = vmul.f32 %v1400, %v1537
      %v1863 = vmul.f32 %v1401, %v1542
      %v1864 = vmul.f32 %v1402, %v1542
      %v1865 = vmul.f32 %v1403, %v1547
      %v1866 = vmul.f32 %v1404, %v1547
      %v1867 = vmul.f32 %v1405, %v1552
      %v1868 = vmul.f32 %v1406, %v1552
      %v1869 = vmul.f32 %v1407, %v1557
      %v1870 = vmul.f32 %v1408, %v1557
      %v1871 = vmul.f32 %v1409, %v1562
      %v1872 = vmul.f32 %v1410, %v1562
      %v1873 = vmul.f32 %v1411, %v1567
      %v1874 = vmul.f32 %v1412, %v1567
      %v1875 = vmul.f32 %v1413, %v1572
      %v1876 = vmul.f32 %v1414, %v1572
      %v1877 = vmul.f32 %v1415, %v1577
      %v1878 = vmul.f32 %v1416, %v1577
      %v1879 = vmul.f32 %v1417, %v1582
      %v1880 = vmul.f32 %v1418, %v1582
      %v1881 = vmul.f32 %v1419, %v1587
      %v1882 = vmul.f32 %v1420, %v1587
      %v1883 = vmul.f32 %v1421, %v1592
      %v1884 = vmul.f32 %v1422, %v1592
      %v1885 = vmul.f32 %v1423, %v1597
      %v1886 = vmul.f32 %v1424, %v1597
      %v1887 = vmul.f32 %v1425, %v1602
      %v1888 = vmul.f32 %v1426, %v1602
      %v1889 = vmul.f32 %v1427, %v1607
      %v1890 = vmul.f32 %v1428, %v1607
      %v1891 = vmul.f32 %v1429, %v1612
      %v1892 = vmul.f32 %v1430, %v1612
      %v1893 = vmul.f32 %v1431, %v1617
      %v1894 = vmul.f32 %v1432, %v1617
      %v1895 = vmul.f32 %v1433, %v1622
      %v1896 = vmul.f32 %v1434, %v1622
      %v1897 = vmul.f32 %v1435, %v1627
      %v1898 = vmul.f32 %v1436, %v1627
      %v1899 = vmul.f32 %v1437, %v1632
      %v1900 = vmul.f32 %v1438, %v1632
      %v1901 = vmul.f32 %v1439, %v1637
      %v1902 = vmul.f32 %v1440, %v1637
      %v1903 = vmul.f32 %v1441, %v1642
      %v1904 = vmul.f32 %v1442, %v1642
      %v1905 = vmul.f32 %v1443, %v1647
      %v1906 = vmul.f32 %v1444, %v1647
      %v1907 = vmul.f32 %v1445, %v1652
      %v1908 = vmul.f32 %v1446, %v1652
      %v1909 = vmul.f32 %v1447, %v1657
      %v1910 = vmul.f32 %v1448, %v1657
      %v1911 = vmul.f32 %v1449, %v1662
      %v1912 = vmul.f32 %v1450, %v1662
      %v1913 = vmul.f32 %v1451, %v1667
      %v1914 = vmul.f32 %v1452, %v1667
      %v1915 = vmul.f32 %v1453, %v1672
      %v1916 = vmul.f32 %v1454, %v1672
      %v1917 = vmul.f32 %v1455, %v1677
      %v1918 = vmul.f32 %v1456, %v1677
      %v1919 = vmul.f32 %v1457, %v1682
      %v1920 = vmul.f32 %v1458, %v1682
      %v1921 = vmul.f32 %v1459, %v1687
      %v1922 = vmul.f32 %v1460, %v1687
      %v1923 = vmul.f32 %v1461, %v1692
      %v1924 = vmul.f32 %v1462, %v1692
      %v1925 = vmul.f32 %v1463, %v1697
      %v1926 = vmul.f32 %v1464, %v1697
      %v1927 = vmul.f32 %v1465, %v1702
      %v1928 = vmul.f32 %v1466, %v1702
      %v1929 = vmul.f32 %v1467, %v1707
      %v1930 = vmul.f32 %v1468, %v1707
      %v1931 = vmul.f32 %v1469, %v1712
      %v1932 = vmul.f32 %v1470, %v1712
      %v1933 = vmul.f32 %v1471, %v1717
      %v1934 = vmul.f32 %v1472, %v1717
      %v1935 = vmul.f32 %v1473, %v1722
      %v1936 = vmul.f32 %v1474, %v1722
      %v1937 = vmul.f32 %v1475, %v1727
      %v1938 = vmul.f32 %v1476, %v1727
      %v1939 = vmul.f32 %v1477, %v1732
      %v1940 = vmul.f32 %v1478, %v1732
      %v1941 = vmul.f32 %v1479, %v1737
      %v1942 = vmul.f32 %v1480, %v1737
      %v1943 = vmul.f32 %v1481, %v1742
      %v1944 = vmul.f32 %v1482, %v1742
      %v1945 = vmul.f32 %v1483, %v1747
      %v1946 = vmul.f32 %v1484, %v1747
      %v1947 = vmul.f32 %v1485, %v1752
      %v1948 = vmul.f32 %v1486, %v1752
      %v1949 = vmul.f32 %v1487, %v1757
      %v1950 = vmul.f32 %v1488, %v1757
      %v1951 = vmul.f32 %v1489, %v1762
      %v1952 = vmul.f32 %v1490, %v1762
      %v1953 = vmul.f32 %v1491, %v1767
      %v1954 = vmul.f32 %v1492, %v1767
      %v1955 = vmul.f32 %v1493, %v1772
      %v1956 = vmul.f32 %v1494, %v1772
      %v1957 = vmul.f32 %v1495, %v1777
      %v1958 = vmul.f32 %v1496, %v1777
      %v1959 = vmul.f32 %v1497, %v1782
      %v1960 = vmul.f32 %v1498, %v1782
      %v1961 = vmul.f32 %v1499, %v1787
      %v1962 = vmul.f32 %v1500, %v1787
      %v1963 = vmul.f32 %v1501, %v1792
      %v1964 = vmul.f32 %v1502, %v1792
      %v1965 = vmul.f32 %v1503, %v1797
      %v1966 = vmul.f32 %v1504, %v1797
      %v1967 = vmul.f32 %v1505, %v1802
      %v1968 = vmul.f32 %v1506, %v1802
      %v1969 = vmul.f32 %v1507, %v1807
      %v1970 = vmul.f32 %v1508, %v1807
      %v1971 = vmul.f32 %v1509, %v1812
      %v1972 = vmul.f32 %v1510, %v1812
      %v1973 = vmul.f32 %v1511, %v1817
      %v1974 = vmul.f32 %v1512, %v1817
      %v1975 = vmul.f32 %v1513, %v1822
      %v1976 = vmul.f32 %v1514, %v1822
      %v1977 = vmul.f32 %v1515, %v1827
      %v1978 = vmul.f32 %v1516, %v1827
      %v1979 = vmul.f32 %v1517, %v1832
      %v1980 = vmul.f32 %v1518, %v1832
      %v1981 = vmul.f32 %v1519, %v1837
      %v1982 = vmul.f32 %v1520, %v1837
      %v1983 = vmul.f32 %v1521, %v1842
      %v1984 = vmul.f32 %v1522, %v1842
      %v1985 = vmul.f32 %v1523, %v1847
      %v1986 = vmul.f32 %v1524, %v1847
      %v1987 = vmul.f32 %v1525, %v1852
      %v1988 = vmul.f32 %v1526, %v1852
      %v1989 = vmul.f32 %v1527, %v1857
      %v1990 = vmul.f32 %v1528, %v1857
      %1991 = vst [vmem:[%s260] sm:$0xff] %v1859
      %vm1992 = vcmask 556032
      %1993 = vst.msk [vmem:[%s260 + $0x8] sm:$0xff] %vm1992, %v1860
      %1994 = vst [vmem:[%s260 + $0x10] sm:$0xff] %v1861
      %1995 = vst.msk [vmem:[%s260 + $0x18] sm:$0xff] %vm1992, %v1862
      %1996 = vst [vmem:[%s260 + $0x20] sm:$0xff] %v1863
      %1997 = vst.msk [vmem:[%s260 + $0x28] sm:$0xff] %vm1992, %v1864
      %1998 = vst [vmem:[%s260 + $0x30] sm:$0xff] %v1865
      %1999 = vst.msk [vmem:[%s260 + $0x38] sm:$0xff] %vm1992, %v1866
      %2000 = vst [vmem:[%s260 + $0x40] sm:$0xff] %v1867
      %2001 = vst.msk [vmem:[%s260 + $0x48] sm:$0xff] %vm1992, %v1868
      %2002 = vst [vmem:[%s260 + $0x50] sm:$0xff] %v1869
      %2003 = vst.msk [vmem:[%s260 + $0x58] sm:$0xff] %vm1992, %v1870
      %2004 = vst [vmem:[%s260 + $0x60] sm:$0xff] %v1871
      %2005 = vst.msk [vmem:[%s260 + $0x68] sm:$0xff] %vm1992, %v1872
      %2006 = vst [vmem:[%s260 + $0x70] sm:$0xff] %v1873
      %2007 = vst.msk [vmem:[%s260 + $0x78] sm:$0xff] %vm1992, %v1874
      %2008 = vst [vmem:[%s260 + $0x80] sm:$0xff] %v1875
      %2009 = vst.msk [vmem:[%s260 + $0x88] sm:$0xff] %vm1992, %v1876
      %2010 = vst [vmem:[%s260 + $0x90] sm:$0xff] %v1877
      %2011 = vst.msk [vmem:[%s260 + $0x98] sm:$0xff] %vm1992, %v1878
      %2012 = vst [vmem:[%s260 + $0xa0] sm:$0xff] %v1879
      %2013 = vst.msk [vmem:[%s260 + $0xa8] sm:$0xff] %vm1992, %v1880
      %2014 = vst [vmem:[%s260 + $0xb0] sm:$0xff] %v1881
      %2015 = vst.msk [vmem:[%s260 + $0xb8] sm:$0xff] %vm1992, %v1882
      %2016 = vst [vmem:[%s260 + $0xc0] sm:$0xff] %v1883
      %2017 = vst.msk [vmem:[%s260 + $0xc8] sm:$0xff] %vm1992, %v1884
      %2018 = vst [vmem:[%s260 + $0xd0] sm:$0xff] %v1885
      %2019 = vst.msk [vmem:[%s260 + $0xd8] sm:$0xff] %vm1992, %v1886
      %2020 = vst [vmem:[%s260 + $0xe0] sm:$0xff] %v1887
      %2021 = vst.msk [vmem:[%s260 + $0xe8] sm:$0xff] %vm1992, %v1888
      %2022 = vst [vmem:[%s260 + $0xf0] sm:$0xff] %v1889
      %2023 = vst.msk [vmem:[%s260 + $0xf8] sm:$0xff] %vm1992, %v1890
      %2024 = vst [vmem:[%s260 + $0x100] sm:$0xff] %v1891
      %2025 = vst.msk [vmem:[%s260 + $0x108] sm:$0xff] %vm1992, %v1892
      %2026 = vst [vmem:[%s260 + $0x110] sm:$0xff] %v1893
      %2027 = vst.msk [vmem:[%s260 + $0x118] sm:$0xff] %vm1992, %v1894
      %2028 = vst [vmem:[%s260 + $0x120] sm:$0xff] %v1895
      %2029 = vst.msk [vmem:[%s260 + $0x128] sm:$0xff] %vm1992, %v1896
      %2030 = vst [vmem:[%s260 + $0x130] sm:$0xff] %v1897
      %2031 = vst.msk [vmem:[%s260 + $0x138] sm:$0xff] %vm1992, %v1898
      %2032 = vst [vmem:[%s260 + $0x140] sm:$0xff] %v1899
      %2033 = vst.msk [vmem:[%s260 + $0x148] sm:$0xff] %vm1992, %v1900
      %2034 = vst [vmem:[%s260 + $0x150] sm:$0xff] %v1901
      %2035 = vst.msk [vmem:[%s260 + $0x158] sm:$0xff] %vm1992, %v1902
      %2036 = vst [vmem:[%s260 + $0x160] sm:$0xff] %v1903
      %2037 = vst.msk [vmem:[%s260 + $0x168] sm:$0xff] %vm1992, %v1904
      %2038 = vst [vmem:[%s260 + $0x170] sm:$0xff] %v1905
      %2039 = vst.msk [vmem:[%s260 + $0x178] sm:$0xff] %vm1992, %v1906
      %2040 = vst [vmem:[%s260 + $0x180] sm:$0xff] %v1907
      %2041 = vst.msk [vmem:[%s260 + $0x188] sm:$0xff] %vm1992, %v1908
      %2042 = vst [vmem:[%s260 + $0x190] sm:$0xff] %v1909
      %2043 = vst.msk [vmem:[%s260 + $0x198] sm:$0xff] %vm1992, %v1910
      %2044 = vst [vmem:[%s260 + $0x1a0] sm:$0xff] %v1911
      %2045 = vst.msk [vmem:[%s260 + $0x1a8] sm:$0xff] %vm1992, %v1912
      %2046 = vst [vmem:[%s260 + $0x1b0] sm:$0xff] %v1913
      %2047 = vst.msk [vmem:[%s260 + $0x1b8] sm:$0xff] %vm1992, %v1914
      %2048 = vst [vmem:[%s260 + $0x1c0] sm:$0xff] %v1915
      %2049 = vst.msk [vmem:[%s260 + $0x1c8] sm:$0xff] %vm1992, %v1916
      %2050 = vst [vmem:[%s260 + $0x1d0] sm:$0xff] %v1917
      %2051 = vst.msk [vmem:[%s260 + $0x1d8] sm:$0xff] %vm1992, %v1918
      %2052 = vst [vmem:[%s260 + $0x1e0] sm:$0xff] %v1919
      %2053 = vst.msk [vmem:[%s260 + $0x1e8] sm:$0xff] %vm1992, %v1920
      %2054 = vst [vmem:[%s260 + $0x1f0] sm:$0xff] %v1921
      %2055 = vst.msk [vmem:[%s260 + $0x1f8] sm:$0xff] %vm1992, %v1922
      %2056 = vst [vmem:[%s260 + $0x200] sm:$0xff] %v1923
      %2057 = vst.msk [vmem:[%s260 + $0x208] sm:$0xff] %vm1992, %v1924
      %2058 = vst [vmem:[%s260 + $0x210] sm:$0xff] %v1925
      %2059 = vst.msk [vmem:[%s260 + $0x218] sm:$0xff] %vm1992, %v1926
      %2060 = vst [vmem:[%s260 + $0x220] sm:$0xff] %v1927
      %2061 = vst.msk [vmem:[%s260 + $0x228] sm:$0xff] %vm1992, %v1928
      %2062 = vst [vmem:[%s260 + $0x230] sm:$0xff] %v1929
      %2063 = vst.msk [vmem:[%s260 + $0x238] sm:$0xff] %vm1992, %v1930
      %2064 = vst [vmem:[%s260 + $0x240] sm:$0xff] %v1931
      %2065 = vst.msk [vmem:[%s260 + $0x248] sm:$0xff] %vm1992, %v1932
      %2066 = vst [vmem:[%s260 + $0x250] sm:$0xff] %v1933
      %2067 = vst.msk [vmem:[%s260 + $0x258] sm:$0xff] %vm1992, %v1934
      %2068 = vst [vmem:[%s260 + $0x260] sm:$0xff] %v1935
      %2069 = vst.msk [vmem:[%s260 + $0x268] sm:$0xff] %vm1992, %v1936
      %2070 = vst [vmem:[%s260 + $0x270] sm:$0xff] %v1937
      %2071 = vst.msk [vmem:[%s260 + $0x278] sm:$0xff] %vm1992, %v1938
      %2072 = vst [vmem:[%s260 + $0x280] sm:$0xff] %v1939
      %2073 = vst.msk [vmem:[%s260 + $0x288] sm:$0xff] %vm1992, %v1940
      %2074 = vst [vmem:[%s260 + $0x290] sm:$0xff] %v1941
      %2075 = vst.msk [vmem:[%s260 + $0x298] sm:$0xff] %vm1992, %v1942
      %2076 = vst [vmem:[%s260 + $0x2a0] sm:$0xff] %v1943
      %2077 = vst.msk [vmem:[%s260 + $0x2a8] sm:$0xff] %vm1992, %v1944
      %2078 = vst [vmem:[%s260 + $0x2b0] sm:$0xff] %v1945
      %2079 = vst.msk [vmem:[%s260 + $0x2b8] sm:$0xff] %vm1992, %v1946
      %2080 = vst [vmem:[%s260 + $0x2c0] sm:$0xff] %v1947
      %2081 = vst.msk [vmem:[%s260 + $0x2c8] sm:$0xff] %vm1992, %v1948
      %2082 = vst [vmem:[%s260 + $0x2d0] sm:$0xff] %v1949
      %2083 = vst.msk [vmem:[%s260 + $0x2d8] sm:$0xff] %vm1992, %v1950
      %2084 = vst [vmem:[%s260 + $0x2e0] sm:$0xff] %v1951
      %2085 = vst.msk [vmem:[%s260 + $0x2e8] sm:$0xff] %vm1992, %v1952
      %2086 = vst [vmem:[%s260 + $0x2f0] sm:$0xff] %v1953
      %2087 = vst.msk [vmem:[%s260 + $0x2f8] sm:$0xff] %vm1992, %v1954
      %2088 = vst [vmem:[%s260 + $0x300] sm:$0xff] %v1955
      %2089 = vst.msk [vmem:[%s260 + $0x308] sm:$0xff] %vm1992, %v1956
      %2090 = vst [vmem:[%s260 + $0x310] sm:$0xff] %v1957
      %2091 = vst.msk [vmem:[%s260 + $0x318] sm:$0xff] %vm1992, %v1958
      %2092 = vst [vmem:[%s260 + $0x320] sm:$0xff] %v1959
      %2093 = vst.msk [vmem:[%s260 + $0x328] sm:$0xff] %vm1992, %v1960
      %2094 = vst [vmem:[%s260 + $0x330] sm:$0xff] %v1961
      %2095 = vst.msk [vmem:[%s260 + $0x338] sm:$0xff] %vm1992, %v1962
      %2096 = vst [vmem:[%s260 + $0x340] sm:$0xff] %v1963
      %2097 = vst.msk [vmem:[%s260 + $0x348] sm:$0xff] %vm1992, %v1964
      %2098 = vst [vmem:[%s260 + $0x350] sm:$0xff] %v1965
      %2099 = vst.msk [vmem:[%s260 + $0x358] sm:$0xff] %vm1992, %v1966
      %2100 = vst [vmem:[%s260 + $0x360] sm:$0xff] %v1967
      %2101 = vst.msk [vmem:[%s260 + $0x368] sm:$0xff] %vm1992, %v1968
      %2102 = vst [vmem:[%s260 + $0x370] sm:$0xff] %v1969
      %2103 = vst.msk [vmem:[%s260 + $0x378] sm:$0xff] %vm1992, %v1970
      %2104 = vst [vmem:[%s260 + $0x380] sm:$0xff] %v1971
      %2105 = vst.msk [vmem:[%s260 + $0x388] sm:$0xff] %vm1992, %v1972
      %2106 = vst [vmem:[%s260 + $0x390] sm:$0xff] %v1973
      %2107 = vst.msk [vmem:[%s260 + $0x398] sm:$0xff] %vm1992, %v1974
      %2108 = vst [vmem:[%s260 + $0x3a0] sm:$0xff] %v1975
      %2109 = vst.msk [vmem:[%s260 + $0x3a8] sm:$0xff] %vm1992, %v1976
      %2110 = vst [vmem:[%s260 + $0x3b0] sm:$0xff] %v1977
      %2111 = vst.msk [vmem:[%s260 + $0x3b8] sm:$0xff] %vm1992, %v1978
      %2112 = vst [vmem:[%s260 + $0x3c0] sm:$0xff] %v1979
      %2113 = vst.msk [vmem:[%s260 + $0x3c8] sm:$0xff] %vm1992, %v1980
      %2114 = vst [vmem:[%s260 + $0x3d0] sm:$0xff] %v1981
      %2115 = vst.msk [vmem:[%s260 + $0x3d8] sm:$0xff] %vm1992, %v1982
      %2116 = vst [vmem:[%s260 + $0x3e0] sm:$0xff] %v1983
      %2117 = vst.msk [vmem:[%s260 + $0x3e8] sm:$0xff] %vm1992, %v1984
      %2118 = vst [vmem:[%s260 + $0x3f0] sm:$0xff] %v1985
      %2119 = vst.msk [vmem:[%s260 + $0x3f8] sm:$0xff] %vm1992, %v1986
      %2120 = vst [vmem:[%s260 + $0x400] sm:$0xff] %v1987
      %2121 = vst.msk [vmem:[%s260 + $0x408] sm:$0xff] %vm1992, %v1988
      %2122 = vst [vmem:[%s260 + $0x410] sm:$0xff] %v1989
      %2123 = vst.msk [vmem:[%s260 + $0x418] sm:$0xff] %vm1992, %v1990
      %s2124 = smul.u32 66, %s20
      %p2125 = scmp.lt.s32.totalorder %s19, 0
      %s2126 = scalar_select %p2125, %s19, 0
      %p2127 = scmp.lt.s32.totalorder %s2124, 131
      %s2128 = scalar_select %p2127, %s2124, 131
      %s2129 = smul.addr %s2128, 2
      %s2130 = smul.addr %s2126, 264
      %s2131 = sadd.s32 %s2129, %s2130
      %s2132 = smul.addr %s2131, 8
      %s2133 = scalar_lea.vmem %s4, %s2132
      // Predicated region
      $region37: #{tpu_custom_call.1} parent=35 // pred_check
        %p2134 = pneg %p143
      $region38: #{tpu_custom_call.1} parent=35 // pred_check_branch
        %2136 = sbr.rel (%p2134) target = $region40
      $region39: #{tpu_custom_call.1} parent=35 // pred_region
        %s2137 = smul.u32 66, %s20
      $region40: #{tpu_custom_call.1} parent=35 // pred_fallthru
        _
    $region36: #{tpu_custom_call.1} parent=5 // pred_fallthru
      _
    %p2138 = scmp.le.s32.totalorder 2, %s10
    // Predicated region
    $region41: #{tpu_custom_call.1} parent=5 // pred_check
      %p2139 = pneg %p2138
    $region42: #{tpu_custom_call.1} parent=5 // pred_check_branch
      %2141 = sbr.rel (%p2139) target = $region44
    $region43: #{tpu_custom_call.1} parent=5 // pred_region
      %s2142 = ssub.s32 %s10, 2
      // Predicated region
      $region45: #{tpu_custom_call.1} parent=43 // pred_check
        %p2143 = pneg %p149
      $region46: #{tpu_custom_call.1} parent=43 // pred_check_branch
        %2145 = sbr.rel (%p2143) target = $region48
      $region47: #{tpu_custom_call.1} parent=43 // pred_region
        %s2146 = smul.u32 66, %s22
        %p2147 = scmp.lt.s32.totalorder %s21, 0
        %s2148 = scalar_select %p2147, %s21, 0
        %p2149 = scmp.lt.s32.totalorder %s2146, 131
        %s2150 = scalar_select %p2149, %s2146, 131
        %s2151 = smul.addr %s2150, 2
        %s2152 = smul.addr %s2148, 264
        %s2153 = sadd.s32 %s2151, %s2152
        %s2154 = smul.addr %s2153, 8
        %s2155 = scalar_lea.vmem %s4, %s2154
      $region48: #{tpu_custom_call.1} parent=43 // pred_fallthru
        _
    $region44: #{tpu_custom_call.1} parent=5 // pred_fallthru
      _
  $region6: #{tpu_custom_call.1} parent=0 // loop_footer
    %s14 = sadd.s32 1, %s10
  $region7: #{tpu_custom_call.1} parent=0 // loop_footer_branch
    %9 = sbr.rel target = $region3
  $region8: #{tpu_custom_call.1} parent=0 // loop_exit
    _

</llo_original>
